<compile_context>
chip_gen: v5e
topology: v5e:2x2
jax: 0.10.0
libtpu: 0.0.40
codegen_flags: <defaults>
</compile_context>

<pallas_src>
import functools

import jax
import jax.numpy as jnp
from jax.experimental import pallas as pl
from jax.experimental.pallas import tpu as pltpu


_VMEM_LIMIT = 48 * 1024 * 1024   # above 16/32 MiB scoped defaults, below v7x 64 MiB
_EPS = 1e-5
_SLOPE = 0.2


def _round_up(x, m):
    return (x + m - 1) // m * m


def _pad2(a, rows, cols):
    r, c = a.shape
    if r == rows and c == cols:
        return a
    return jnp.pad(a, ((0, rows - r), (0, cols - c)))


# ---------------------------------------------------------------------------
# Kernel 1: tiled conv-as-GEMM (bf16 in, f32 accumulate) + per-tile BN stats
# ---------------------------------------------------------------------------
def _conv_gemm_stats_kernel(x_ref, w_ref, y_ref, bsum_ref, bsq_ref, acc_ref):
    k = pl.program_id(1)

    @pl.when(k == 0)
    def _():
        acc_ref[...] = jnp.zeros_like(acc_ref)

    acc_ref[...] += jnp.dot(x_ref[...], w_ref[...],
                            preferred_element_type=jnp.float32)

    @pl.when(k == pl.num_programs(1) - 1)
    def _():
        acc = acc_ref[...]
        y_ref[...] = acc
        # Per-M-tile partial batch-norm statistics (reduced over rows).
        bsum_ref[...] = jnp.sum(acc, axis=0, keepdims=True)[None]
        bsq_ref[...] = jnp.sum(acc * acc, axis=0, keepdims=True)[None]


def conv_gemm_stats(x, w, tm, tk):
    Mpad, Kpad = x.shape
    Npad = w.shape[1]
    m_tiles = Mpad // tm
    k_tiles = Kpad // tk
    return pl.pallas_call(
        _conv_gemm_stats_kernel,
        out_shape=(
            jax.ShapeDtypeStruct((Mpad, Npad), jnp.float32),
            jax.ShapeDtypeStruct((m_tiles, 1, Npad), jnp.float32),
            jax.ShapeDtypeStruct((m_tiles, 1, Npad), jnp.float32),
        ),
        grid_spec=pltpu.PrefetchScalarGridSpec(
            num_scalar_prefetch=0,
            grid=(m_tiles, k_tiles),
            in_specs=[
                pl.BlockSpec((tm, tk), lambda i, k: (i, k)),
                pl.BlockSpec((tk, Npad), lambda i, k: (k, 0)),
            ],
            out_specs=[
                pl.BlockSpec((tm, Npad), lambda i, k: (i, 0)),
                pl.BlockSpec((1, 1, Npad), lambda i, k: (i, 0, 0)),
                pl.BlockSpec((1, 1, Npad), lambda i, k: (i, 0, 0)),
            ],
            scratch_shapes=[pltpu.VMEM((tm, Npad), jnp.float32)],
        ),
        compiler_params=pltpu.CompilerParams(
            dimension_semantics=("parallel", "arbitrary"),
            vmem_limit_bytes=_VMEM_LIMIT,
        ),
    )(x, w)


# ---------------------------------------------------------------------------
# Kernel 2: tiled BatchNorm apply (y*scale + shift) + LeakyReLU -> bf16
# ---------------------------------------------------------------------------
def _bn_apply_lrelu_kernel(y_ref, scale_ref, shift_ref, o_ref, *, slope):
    y = y_ref[...] * scale_ref[...] + shift_ref[...]
    o_ref[...] = jnp.where(y >= 0, y, slope * y).astype(o_ref.dtype)


def bn_apply_lrelu(y, scale, shift, tm, slope):
    Mpad, Npad = y.shape
    m_tiles = Mpad // tm
    return pl.pallas_call(
        functools.partial(_bn_apply_lrelu_kernel, slope=slope),
        out_shape=jax.ShapeDtypeStruct((Mpad, Npad), jnp.bfloat16),
        grid_spec=pltpu.PrefetchScalarGridSpec(
            num_scalar_prefetch=0,
            grid=(m_tiles,),
            in_specs=[
                pl.BlockSpec((tm, Npad), lambda i: (i, 0)),
                pl.BlockSpec((1, Npad), lambda i: (0, 0)),
                pl.BlockSpec((1, Npad), lambda i: (0, 0)),
            ],
            out_specs=pl.BlockSpec((tm, Npad), lambda i: (i, 0)),
        ),
        compiler_params=pltpu.CompilerParams(
            dimension_semantics=("parallel",),
            vmem_limit_bytes=_VMEM_LIMIT,
        ),
    )(y, scale, shift)


# ---------------------------------------------------------------------------
# Kernel 3: fused head  Linear(lin_in,256) + LeakyReLU + Linear(256,1)
# ---------------------------------------------------------------------------
def _head_kernel(x_ref, w1_ref, b1_ref, w2_ref, b2_ref, o_ref, acc_ref, *, slope):
    k = pl.program_id(1)

    @pl.when(k == 0)
    def _():
        acc_ref[...] = jnp.zeros_like(acc_ref)

    acc_ref[...] += jnp.dot(x_ref[...], w1_ref[...],
                            preferred_element_type=jnp.float32)

    @pl.when(k == pl.num_programs(1) - 1)
    def _():
        h = acc_ref[...] + b1_ref[...]
        h = jnp.where(h >= 0, h, slope * h)
        # Linear(256, 1) as a fused cross-lane reduction (no N=1 MXU matmul,
        # no HBM round-trip of the hidden activations).
        o_ref[...] = jnp.sum(h * w2_ref[...], axis=1, keepdims=True) + b2_ref[...]


def head_forward(flat, w1, b1, w2row, b2, slope=_SLOPE):
    M, K = flat.shape
    H = w1.shape[1]                      # 256, already lane-aligned
    tm = min(512, _round_up(M, 16))
    Mpad = _round_up(M, tm)
    tk = min(512, _round_up(K, 128))
    Kpad = _round_up(K, tk)

    x_p = _pad2(flat, Mpad, Kpad).astype(jnp.bfloat16)
    w1_p = _pad2(w1, Kpad, H).astype(jnp.bfloat16)

    out = pl.pallas_call(
        functools.partial(_head_kernel, slope=slope),
        out_shape=jax.ShapeDtypeStruct((Mpad, 1), jnp.float32),
        grid_spec=pltpu.PrefetchScalarGridSpec(
            num_scalar_prefetch=0,
            grid=(Mpad // tm, Kpad // tk),
            in_specs=[
                pl.BlockSpec((tm, tk), lambda i, k: (i, k)),
                pl.BlockSpec((tk, H), lambda i, k: (k, 0)),
                pl.BlockSpec((1, H), lambda i, k: (0, 0)),
                pl.BlockSpec((1, H), lambda i, k: (0, 0)),
                pl.BlockSpec((1, 1), lambda i, k: (0, 0)),
            ],
            out_specs=pl.BlockSpec((tm, 1), lambda i, k: (i, 0)),
            scratch_shapes=[pltpu.VMEM((tm, H), jnp.float32)],
        ),
        compiler_params=pltpu.CompilerParams(
            dimension_semantics=("parallel", "arbitrary"),
            vmem_limit_bytes=_VMEM_LIMIT,
        ),
    )(x_p, w1_p, b1, w2row, b2)
    return out[:M]


# ---------------------------------------------------------------------------
# Glue: im2col patch extraction (plain JAX, static shapes)
# ---------------------------------------------------------------------------
def im2col(x_nhwc, kh, kw, stride, pad):
    # TODO(synk): form patches inside the conv kernel (overlapping-window
    # BlockSpecs / manual DMA gather) instead of materializing the kh*kw-
    # inflated patch matrix in HBM.
    N, H, W, C = x_nhwc.shape
    xp = jnp.pad(x_nhwc, ((0, 0), (pad, pad), (pad, pad), (0, 0)))
    OH = (H + 2 * pad - kh) // stride + 1
    OW = (W + 2 * pad - kw) // stride + 1
    cols = []
    for i in range(kh):
        for j in range(kw):
            cols.append(xp[:, i:i + stride * OH:stride, j:j + stride * OW:stride, :])
    patches = jnp.stack(cols, axis=3)                 # (N, OH, OW, kh*kw, C)
    return patches.reshape(N * OH * OW, kh * kw * C), (N, OH, OW)


# ---------------------------------------------------------------------------
# One Conv(+BN+LeakyReLU) block
# ---------------------------------------------------------------------------
def conv_bn_lrelu_block(x_nhwc, w, gamma, beta, kh, kw, stride, pad,
                        eps=_EPS, slope=_SLOPE):
    patches, (N, OH, OW) = im2col(x_nhwc, kh, kw, stride, pad)
    M, K = patches.shape
    Cout = w.shape[1]

    tm = min(512, _round_up(M, 16))
    Mpad = _round_up(M, tm)
    tk = min(512, _round_up(K, 128))
    Kpad = _round_up(K, tk)
    Npad = _round_up(Cout, 128)

    x_p = _pad2(patches, Mpad, Kpad).astype(jnp.bfloat16)
    w_p = _pad2(w, Kpad, Npad).astype(jnp.bfloat16)

    y, bsum, bsq = conv_gemm_stats(x_p, w_p, tm, tk)

    # Training-mode BatchNorm statistics (biased variance). Padded rows of `y`
    # are exactly zero (zero-padded patches, no conv bias), so dividing the
    # padded-row-inclusive sums by the valid row count M is exact.
    ssum = jnp.sum(bsum[:, 0, :], axis=0)
    ssq = jnp.sum(bsq[:, 0, :], axis=0)
    mean = ssum / M
    var = jnp.maximum(ssq / M - mean * mean, 0.0)

    gamma_p = jnp.pad(gamma.astype(jnp.float32), (0, Npad - Cout))
    beta_p = jnp.pad(beta.astype(jnp.float32), (0, Npad - Cout))
    scale = gamma_p * jax.lax.rsqrt(var + eps)
    shift = beta_p - mean * scale

    out = bn_apply_lrelu(y, scale.reshape(1, Npad), shift.reshape(1, Npad),
                         tm, slope)
    return out[:M, :Cout].reshape(N, OH, OW, Cout)


# ---------------------------------------------------------------------------
# Parameters (shapes follow the nn.Module __init__; conv bias omitted because
# training-mode BatchNorm cancels a per-channel conv bias exactly)
# ---------------------------------------------------------------------------
def init_params(key, channels, size):
    h4, w4 = size[0] // 4, size[1] // 4
    lin_in = channels * h4 * w4

    def conv_w(k, kh, kw, cin, cout):
        scale = 1.0 / jnp.sqrt(kh * kw * cin)
        # stored directly in (kh*kw*cin, cout) im2col-GEMM layout
        return jax.random.uniform(k, (kh * kw * cin, cout), jnp.float32,
                                  -scale, scale)

    def lin_w(k, fin, fout):
        scale = 1.0 / jnp.sqrt(fin)
        return jax.random.uniform(k, (fin, fout), jnp.float32, -scale, scale)

    keys = jax.random.split(key, 7)
    return {
        # conv1: channels -> 2*channels, k=4, s=2, p=1
        "w1": conv_w(keys[0], 4, 4, channels, 2 * channels),
        "g1": jnp.ones((2 * channels,), jnp.float32),
        "be1": jnp.zeros((2 * channels,), jnp.float32),
        # conv2: 2*channels -> 4*channels, k=4, s=2, p=1
        "w2": conv_w(keys[1], 4, 4, 2 * channels, 4 * channels),
        "g2": jnp.ones((4 * channels,), jnp.float32),
        "be2": jnp.zeros((4 * channels,), jnp.float32),
        # conv3: 4*channels -> channels, k=3, s=1, p=1
        "w3": conv_w(keys[2], 3, 3, 4 * channels, channels),
        "g3": jnp.ones((channels,), jnp.float32),
        "be3": jnp.zeros((channels,), jnp.float32),
        # head: Linear(lin_in, 256) -> LeakyReLU(0.2) -> Linear(256, 1)
        "wl1": lin_w(keys[3], lin_in, 256),
        "bl1": jax.random.uniform(keys[4], (1, 256), jnp.float32, -0.05, 0.05),
        "wl2": lin_w(keys[5], 256, 1),
        "bl2": jax.random.uniform(keys[6], (1, 1), jnp.float32, -0.05, 0.05),
    }


# ---------------------------------------------------------------------------
# Forward pass
# ---------------------------------------------------------------------------
def vision_discriminator_forward(x_nchw, params):
    # NCHW -> NHWC, bf16 GEMM inputs (f32 accumulation inside the kernels).
    x = jnp.transpose(x_nchw, (0, 2, 3, 1)).astype(jnp.bfloat16)

    x = conv_bn_lrelu_block(x, params["w1"], params["g1"], params["be1"], 4, 4, 2, 1)
    x = conv_bn_lrelu_block(x, params["w2"], params["g2"], params["be2"], 4, 4, 2, 1)
    x = conv_bn_lrelu_block(x, params["w3"], params["g3"], params["be3"], 3, 3, 1, 1)

    # Flatten in PyTorch NCHW order: (N, C, H, W) -> (N, C*H*W).
    N = x.shape[0]
    flat = jnp.transpose(x, (0, 3, 1, 2)).reshape(N, -1)

    w2row = params["wl2"].reshape(1, -1)   # (256, 1) -> (1, 256)
    return head_forward(flat, params["wl1"], params["bl1"], w2row, params["bl2"])


# ---------------------------------------------------------------------------
if __name__ == "__main__":
    key = jax.random.PRNGKey(0)
    kx, kp = jax.random.split(key)

    channels = 4
    size = (16, 16)
    batch = 2

    x = jax.random.normal(kx, (batch, channels, size[0], size[1]), jnp.float32)
    params = init_params(kp, channels, size)

    out = jax.jit(vision_discriminator_forward)(x, params)
    out = jax.block_until_ready(out)
    assert out.shape == (batch, 1), out.shape
    assert bool(jnp.all(jnp.isfinite(out)))
    print("KERNEL_OK")
</pallas_src>

<mosaic_0001>
module attributes {stable_mosaic.version = 11 : i64} {
  func.func @_bn_apply_lrelu_kernel(%arg0: i32, %arg1: memref<128x128xf32, #tpu.memory_space<vmem>>, %arg2: memref<1x128xf32, #tpu.memory_space<vmem>>, %arg3: memref<1x128xf32, #tpu.memory_space<vmem>>, %arg4: memref<128x128xbf16, #tpu.memory_space<vmem>>) attributes {dimension_semantics = [#tpu.dimension_semantics<parallel>], iteration_bounds = array<i64: 1>, scalar_prefetch = 0 : i64, scratch_operands = 0 : i64, tpu.core_type = #tpu.core_type<tc>, window_params = [{transform_indices = @transform_0, window_bounds = array<i64: 128, 128>}, {pipeline_mode = #tpu.pipeline_mode<synchronous>, transform_indices = @transform_1, window_bounds = array<i64: 1, 128>}, {pipeline_mode = #tpu.pipeline_mode<synchronous>, transform_indices = @transform_2, window_bounds = array<i64: 1, 128>}, {transform_indices = @transform_3, window_bounds = array<i64: 128, 128>}]} {
    %c0 = arith.constant 0 : index
    %c0_0 = arith.constant 0 : index
    %0 = vector.load %arg1[%c0, %c0_0] : memref<128x128xf32, #tpu.memory_space<vmem>>, vector<128x128xf32>
    %c0_1 = arith.constant 0 : index
    %c0_2 = arith.constant 0 : index
    %1 = vector.load %arg2[%c0_1, %c0_2] : memref<1x128xf32, #tpu.memory_space<vmem>>, vector<1x128xf32>
    %2 = vector.broadcast %1 : vector<1x128xf32> to vector<128x128xf32>
    %3 = arith.mulf %0, %2 : vector<128x128xf32>
    %c0_3 = arith.constant 0 : index
    %c0_4 = arith.constant 0 : index
    %4 = vector.load %arg3[%c0_3, %c0_4] : memref<1x128xf32, #tpu.memory_space<vmem>>, vector<1x128xf32>
    %5 = vector.broadcast %4 : vector<1x128xf32> to vector<128x128xf32>
    %6 = arith.addf %3, %5 : vector<128x128xf32>
    %cst = arith.constant 0.000000e+00 : f32
    %7 = vector.broadcast %cst : f32 to vector<128x128xf32>
    %8 = arith.cmpf oge, %6, %7 : vector<128x128xf32>
    %cst_5 = arith.constant 2.000000e-01 : f32
    %9 = vector.broadcast %cst_5 : f32 to vector<128x128xf32>
    %10 = arith.mulf %9, %6 : vector<128x128xf32>
    %11 = arith.select %8, %6, %10 : vector<128x128xi1>, vector<128x128xf32>
    %12 = arith.truncf %11 : vector<128x128xf32> to vector<128x128xbf16>
    %c0_6 = arith.constant 0 : index
    %c0_7 = arith.constant 0 : index
    %13 = vector.load %arg4[%c0_6, %c0_7] : memref<128x128xbf16, #tpu.memory_space<vmem>>, vector<128x128xbf16>
    tpu.vector_store %arg4[%c0_6, %c0_7], %12 {strides = array<i32>} : memref<128x128xbf16, #tpu.memory_space<vmem>>, vector<128x128xbf16>,
    return
  }
  func.func @transform_0(%arg0: i32) -> (i32, i32) {
    %c0_i32 = arith.constant 0 : i32
    %c0_i32_0 = arith.constant 0 : i32
    return %arg0, %c0_i32 : i32, i32
  }
  func.func @transform_1(%arg0: i32) -> (i32, i32) {
    %c0_i32 = arith.constant 0 : i32
    %c0_i32_0 = arith.constant 0 : i32
    %c0_i32_1 = arith.constant 0 : i32
    return %c0_i32, %c0_i32_0 : i32, i32
  }
  func.func @transform_2(%arg0: i32) -> (i32, i32) {
    %c0_i32 = arith.constant 0 : i32
    %c0_i32_0 = arith.constant 0 : i32
    %c0_i32_1 = arith.constant 0 : i32
    return %c0_i32, %c0_i32_0 : i32, i32
  }
  func.func @transform_3(%arg0: i32) -> (i32, i32) {
    %c0_i32 = arith.constant 0 : i32
    %c0_i32_0 = arith.constant 0 : i32
    return %arg0, %c0_i32 : i32, i32
  }
}

module attributes {stable_mosaic.version = 11 : i64} {
  func.func @_conv_gemm_stats_kernel(%arg0: i32, %arg1: i32, %arg2: memref<128x128xbf16, #tpu.memory_space<vmem>>, %arg3: memref<128x128xbf16, #tpu.memory_space<vmem>>, %arg4: memref<128x128xf32, #tpu.memory_space<vmem>>, %arg5: memref<1x1x128xf32, #tpu.memory_space<vmem>>, %arg6: memref<1x1x128xf32, #tpu.memory_space<vmem>>, %arg7: memref<128x128xf32, #tpu.memory_space<vmem>>) attributes {dimension_semantics = [#tpu.dimension_semantics<parallel>, #tpu.dimension_semantics<arbitrary>], iteration_bounds = array<i64: 1, 1>, scalar_prefetch = 0 : i64, scratch_operands = 1 : i64, tpu.core_type = #tpu.core_type<tc>, window_params = [{transform_indices = @transform_0, window_bounds = array<i64: 128, 128>}, {transform_indices = @transform_1, window_bounds = array<i64: 128, 128>}, {transform_indices = @transform_2, window_bounds = array<i64: 128, 128>}, {transform_indices = @transform_3, window_bounds = array<i64: 1, 1, 128>}, {transform_indices = @transform_4, window_bounds = array<i64: 1, 1, 128>}]} {
    %c0_i32 = arith.constant 0 : i32
    %0 = arith.cmpi eq, %arg1, %c0_i32 : i32
    %1 = arith.extui %0 : i1 to i32
    %c0_i32_0 = arith.constant 0 : i32
    %2 = arith.cmpi ne, %1, %c0_i32_0 : i32
    scf.if %2 {
      %cst_10 = arith.constant 0.000000e+00 : f32
      %12 = vector.broadcast %cst_10 : f32 to vector<128x128xf32>
      %c0_11 = arith.constant 0 : index
      %c0_12 = arith.constant 0 : index
      %13 = vector.load %arg7[%c0_11, %c0_12] : memref<128x128xf32, #tpu.memory_space<vmem>>, vector<128x128xf32>
      tpu.vector_store %arg7[%c0_11, %c0_12], %12 {strides = array<i32>} : memref<128x128xf32, #tpu.memory_space<vmem>>, vector<128x128xf32>,
    } else {
    }
    %c0 = arith.constant 0 : index
    %c0_1 = arith.constant 0 : index
    %3 = vector.load %arg7[%c0, %c0_1] : memref<128x128xf32, #tpu.memory_space<vmem>>, vector<128x128xf32>
    %c0_2 = arith.constant 0 : index
    %c0_3 = arith.constant 0 : index
    %4 = vector.load %arg2[%c0_2, %c0_3] : memref<128x128xbf16, #tpu.memory_space<vmem>>, vector<128x128xbf16>
    %c0_4 = arith.constant 0 : index
    %c0_5 = arith.constant 0 : index
    %5 = vector.load %arg3[%c0_4, %c0_5] : memref<128x128xbf16, #tpu.memory_space<vmem>>, vector<128x128xbf16>
    %cst = arith.constant dense<0.000000e+00> : vector<128x128xf32>
    %6 = tpu.matmul %4, %5, %cst {dimension_numbers = #tpu.dot_dimension_numbers<[1], [0], [0], [1], [0, 0, 1, 1], [], []>} : vector<128x128xbf16>, vector<128x128xbf16>, vector<128x128xf32> -> vector<128x128xf32>
    %7 = arith.addf %3, %6 : vector<128x128xf32>
    %c0_6 = arith.constant 0 : index
    %c0_7 = arith.constant 0 : index
    %8 = vector.load %arg7[%c0_6, %c0_7] : memref<128x128xf32, #tpu.memory_space<vmem>>, vector<128x128xf32>
    tpu.vector_store %arg7[%c0_6, %c0_7], %7 {strides = array<i32>} : memref<128x128xf32, #tpu.memory_space<vmem>>, vector<128x128xf32>,
    %c0_i32_8 = arith.constant 0 : i32
    %9 = arith.cmpi eq, %arg1, %c0_i32_8 : i32
    %10 = arith.extui %9 : i1 to i32
    %c0_i32_9 = arith.constant 0 : i32
    %11 = arith.cmpi ne, %10, %c0_i32_9 : i32
    scf.if %11 {
      %c0_10 = arith.constant 0 : index
      %c0_11 = arith.constant 0 : index
      %12 = vector.load %arg7[%c0_10, %c0_11] : memref<128x128xf32, #tpu.memory_space<vmem>>, vector<128x128xf32>
      %c0_12 = arith.constant 0 : index
      %c0_13 = arith.constant 0 : index
      %13 = vector.load %arg4[%c0_12, %c0_13] : memref<128x128xf32, #tpu.memory_space<vmem>>, vector<128x128xf32>
      tpu.vector_store %arg4[%c0_12, %c0_13], %12 {strides = array<i32>} : memref<128x128xf32, #tpu.memory_space<vmem>>, vector<128x128xf32>,
      %cst_14 = arith.constant dense<0.000000e+00> : vector<128xf32>
      %14 = vector.multi_reduction <add>, %12, %cst_14 [0] : vector<128x128xf32> to vector<128xf32>
      %15 = vector.shape_cast %14 : vector<128xf32> to vector<1x128xf32>
      %16 = vector.shape_cast %15 : vector<1x128xf32> to vector<1x1x128xf32>
      %c0_15 = arith.constant 0 : index
      %c0_16 = arith.constant 0 : index
      %c0_17 = arith.constant 0 : index
      %17 = vector.load %arg5[%c0_15, %c0_16, %c0_17] : memref<1x1x128xf32, #tpu.memory_space<vmem>>, vector<1x1x128xf32>
      tpu.vector_store %arg5[%c0_15, %c0_16, %c0_17], %16 {strides = array<i32>} : memref<1x1x128xf32, #tpu.memory_space<vmem>>, vector<1x1x128xf32>,
      %18 = arith.mulf %12, %12 : vector<128x128xf32>
      %cst_18 = arith.constant dense<0.000000e+00> : vector<128xf32>
      %19 = vector.multi_reduction <add>, %18, %cst_18 [0] : vector<128x128xf32> to vector<128xf32>
      %20 = vector.shape_cast %19 : vector<128xf32> to vector<1x128xf32>
      %21 = vector.shape_cast %20 : vector<1x128xf32> to vector<1x1x128xf32>
      %c0_19 = arith.constant 0 : index
      %c0_20 = arith.constant 0 : index
      %c0_21 = arith.constant 0 : index
      %22 = vector.load %arg6[%c0_19, %c0_20, %c0_21] : memref<1x1x128xf32, #tpu.memory_space<vmem>>, vector<1x1x128xf32>
      tpu.vector_store %arg6[%c0_19, %c0_20, %c0_21], %21 {strides = array<i32>} : memref<1x1x128xf32, #tpu.memory_space<vmem>>, vector<1x1x128xf32>,
    } else {
    }
    return
  }
  func.func @transform_0(%arg0: i32, %arg1: i32) -> (i32, i32) {
    %c0_i32 = arith.constant 0 : i32
    return %arg0, %arg1 : i32, i32
  }
  func.func @transform_1(%arg0: i32, %arg1: i32) -> (i32, i32) {
    %c0_i32 = arith.constant 0 : i32
    %c0_i32_0 = arith.constant 0 : i32
    return %arg1, %c0_i32 : i32, i32
  }
  func.func @transform_2(%arg0: i32, %arg1: i32) -> (i32, i32) {
    %c0_i32 = arith.constant 0 : i32
    %c0_i32_0 = arith.constant 0 : i32
    return %arg0, %c0_i32 : i32, i32
  }
  func.func @transform_3(%arg0: i32, %arg1: i32) -> (i32, i32, i32) {
    %c0_i32 = arith.constant 0 : i32
    %c0_i32_0 = arith.constant 0 : i32
    %c0_i32_1 = arith.constant 0 : i32
    return %arg0, %c0_i32, %c0_i32_0 : i32, i32, i32
  }
  func.func @transform_4(%arg0: i32, %arg1: i32) -> (i32, i32, i32) {
    %c0_i32 = arith.constant 0 : i32
    %c0_i32_0 = arith.constant 0 : i32
    %c0_i32_1 = arith.constant 0 : i32
    return %arg0, %c0_i32, %c0_i32_0 : i32, i32, i32
  }
}

module attributes {stable_mosaic.version = 11 : i64} {
  func.func @_conv_gemm_stats_kernel(%arg0: i32, %arg1: i32, %arg2: memref<32x128xbf16, #tpu.memory_space<vmem>>, %arg3: memref<128x128xbf16, #tpu.memory_space<vmem>>, %arg4: memref<32x128xf32, #tpu.memory_space<vmem>>, %arg5: memref<1x1x128xf32, #tpu.memory_space<vmem>>, %arg6: memref<1x1x128xf32, #tpu.memory_space<vmem>>, %arg7: memref<32x128xf32, #tpu.memory_space<vmem>>) attributes {dimension_semantics = [#tpu.dimension_semantics<parallel>, #tpu.dimension_semantics<arbitrary>], iteration_bounds = array<i64: 1, 1>, scalar_prefetch = 0 : i64, scratch_operands = 1 : i64, tpu.core_type = #tpu.core_type<tc>, window_params = [{transform_indices = @transform_0, window_bounds = array<i64: 32, 128>}, {transform_indices = @transform_1, window_bounds = array<i64: 128, 128>}, {transform_indices = @transform_2, window_bounds = array<i64: 32, 128>}, {transform_indices = @transform_3, window_bounds = array<i64: 1, 1, 128>}, {transform_indices = @transform_4, window_bounds = array<i64: 1, 1, 128>}]} {
    %c0_i32 = arith.constant 0 : i32
    %0 = arith.cmpi eq, %arg1, %c0_i32 : i32
    %1 = arith.extui %0 : i1 to i32
    %c0_i32_0 = arith.constant 0 : i32
    %2 = arith.cmpi ne, %1, %c0_i32_0 : i32
    scf.if %2 {
      %cst_10 = arith.constant 0.000000e+00 : f32
      %12 = vector.broadcast %cst_10 : f32 to vector<32x128xf32>
      %c0_11 = arith.constant 0 : index
      %c0_12 = arith.constant 0 : index
      %13 = vector.load %arg7[%c0_11, %c0_12] : memref<32x128xf32, #tpu.memory_space<vmem>>, vector<32x128xf32>
      tpu.vector_store %arg7[%c0_11, %c0_12], %12 {strides = array<i32>} : memref<32x128xf32, #tpu.memory_space<vmem>>, vector<32x128xf32>,
    } else {
    }
    %c0 = arith.constant 0 : index
    %c0_1 = arith.constant 0 : index
    %3 = vector.load %arg7[%c0, %c0_1] : memref<32x128xf32, #tpu.memory_space<vmem>>, vector<32x128xf32>
    %c0_2 = arith.constant 0 : index
    %c0_3 = arith.constant 0 : index
    %4 = vector.load %arg2[%c0_2, %c0_3] : memref<32x128xbf16, #tpu.memory_space<vmem>>, vector<32x128xbf16>
    %c0_4 = arith.constant 0 : index
    %c0_5 = arith.constant 0 : index
    %5 = vector.load %arg3[%c0_4, %c0_5] : memref<128x128xbf16, #tpu.memory_space<vmem>>, vector<128x128xbf16>
    %cst = arith.constant dense<0.000000e+00> : vector<32x128xf32>
    %6 = tpu.matmul %4, %5, %cst {dimension_numbers = #tpu.dot_dimension_numbers<[1], [0], [0], [1], [0, 0, 1, 1], [], []>} : vector<32x128xbf16>, vector<128x128xbf16>, vector<32x128xf32> -> vector<32x128xf32>
    %7 = arith.addf %3, %6 : vector<32x128xf32>
    %c0_6 = arith.constant 0 : index
    %c0_7 = arith.constant 0 : index
    %8 = vector.load %arg7[%c0_6, %c0_7] : memref<32x128xf32, #tpu.memory_space<vmem>>, vector<32x128xf32>
    tpu.vector_store %arg7[%c0_6, %c0_7], %7 {strides = array<i32>} : memref<32x128xf32, #tpu.memory_space<vmem>>, vector<32x128xf32>,
    %c0_i32_8 = arith.constant 0 : i32
    %9 = arith.cmpi eq, %arg1, %c0_i32_8 : i32
    %10 = arith.extui %9 : i1 to i32
    %c0_i32_9 = arith.constant 0 : i32
    %11 = arith.cmpi ne, %10, %c0_i32_9 : i32
    scf.if %11 {
      %c0_10 = arith.constant 0 : index
      %c0_11 = arith.constant 0 : index
      %12 = vector.load %arg7[%c0_10, %c0_11] : memref<32x128xf32, #tpu.memory_space<vmem>>, vector<32x128xf32>
      %c0_12 = arith.constant 0 : index
      %c0_13 = arith.constant 0 : index
      %13 = vector.load %arg4[%c0_12, %c0_13] : memref<32x128xf32, #tpu.memory_space<vmem>>, vector<32x128xf32>
      tpu.vector_store %arg4[%c0_12, %c0_13], %12 {strides = array<i32>} : memref<32x128xf32, #tpu.memory_space<vmem>>, vector<32x128xf32>,
      %cst_14 = arith.constant dense<0.000000e+00> : vector<128xf32>
      %14 = vector.multi_reduction <add>, %12, %cst_14 [0] : vector<32x128xf32> to vector<128xf32>
      %15 = vector.shape_cast %14 : vector<128xf32> to vector<1x128xf32>
      %16 = vector.shape_cast %15 : vector<1x128xf32> to vector<1x1x128xf32>
      %c0_15 = arith.constant 0 : index
      %c0_16 = arith.constant 0 : index
      %c0_17 = arith.constant 0 : index
      %17 = vector.load %arg5[%c0_15, %c0_16, %c0_17] : memref<1x1x128xf32, #tpu.memory_space<vmem>>, vector<1x1x128xf32>
      tpu.vector_store %arg5[%c0_15, %c0_16, %c0_17], %16 {strides = array<i32>} : memref<1x1x128xf32, #tpu.memory_space<vmem>>, vector<1x1x128xf32>,
      %18 = arith.mulf %12, %12 : vector<32x128xf32>
      %cst_18 = arith.constant dense<0.000000e+00> : vector<128xf32>
      %19 = vector.multi_reduction <add>, %18, %cst_18 [0] : vector<32x128xf32> to vector<128xf32>
      %20 = vector.shape_cast %19 : vector<128xf32> to vector<1x128xf32>
      %21 = vector.shape_cast %20 : vector<1x128xf32> to vector<1x1x128xf32>
      %c0_19 = arith.constant 0 : index
      %c0_20 = arith.constant 0 : index
      %c0_21 = arith.constant 0 : index
      %22 = vector.load %arg6[%c0_19, %c0_20, %c0_21] : memref<1x1x128xf32, #tpu.memory_space<vmem>>, vector<1x1x128xf32>
      tpu.vector_store %arg6[%c0_19, %c0_20, %c0_21], %21 {strides = array<i32>} : memref<1x1x128xf32, #tpu.memory_space<vmem>>, vector<1x1x128xf32>,
    } else {
    }
    return
  }
  func.func @transform_0(%arg0: i32, %arg1: i32) -> (i32, i32) {
    %c0_i32 = arith.constant 0 : i32
    return %arg0, %arg1 : i32, i32
  }
  func.func @transform_1(%arg0: i32, %arg1: i32) -> (i32, i32) {
    %c0_i32 = arith.constant 0 : i32
    %c0_i32_0 = arith.constant 0 : i32
    return %arg1, %c0_i32 : i32, i32
  }
  func.func @transform_2(%arg0: i32, %arg1: i32) -> (i32, i32) {
    %c0_i32 = arith.constant 0 : i32
    %c0_i32_0 = arith.constant 0 : i32
    return %arg0, %c0_i32 : i32, i32
  }
  func.func @transform_3(%arg0: i32, %arg1: i32) -> (i32, i32, i32) {
    %c0_i32 = arith.constant 0 : i32
    %c0_i32_0 = arith.constant 0 : i32
    %c0_i32_1 = arith.constant 0 : i32
    return %arg0, %c0_i32, %c0_i32_0 : i32, i32, i32
  }
  func.func @transform_4(%arg0: i32, %arg1: i32) -> (i32, i32, i32) {
    %c0_i32 = arith.constant 0 : i32
    %c0_i32_0 = arith.constant 0 : i32
    %c0_i32_1 = arith.constant 0 : i32
    return %arg0, %c0_i32, %c0_i32_0 : i32, i32, i32
  }
}

module attributes {stable_mosaic.version = 11 : i64} {
  func.func @_bn_apply_lrelu_kernel(%arg0: i32, %arg1: memref<32x128xf32, #tpu.memory_space<vmem>>, %arg2: memref<1x128xf32, #tpu.memory_space<vmem>>, %arg3: memref<1x128xf32, #tpu.memory_space<vmem>>, %arg4: memref<32x128xbf16, #tpu.memory_space<vmem>>) attributes {dimension_semantics = [#tpu.dimension_semantics<parallel>], iteration_bounds = array<i64: 1>, scalar_prefetch = 0 : i64, scratch_operands = 0 : i64, tpu.core_type = #tpu.core_type<tc>, window_params = [{transform_indices = @transform_0, window_bounds = array<i64: 32, 128>}, {pipeline_mode = #tpu.pipeline_mode<synchronous>, transform_indices = @transform_1, window_bounds = array<i64: 1, 128>}, {pipeline_mode = #tpu.pipeline_mode<synchronous>, transform_indices = @transform_2, window_bounds = array<i64: 1, 128>}, {transform_indices = @transform_3, window_bounds = array<i64: 32, 128>}]} {
    %c0 = arith.constant 0 : index
    %c0_0 = arith.constant 0 : index
    %0 = vector.load %arg1[%c0, %c0_0] : memref<32x128xf32, #tpu.memory_space<vmem>>, vector<32x128xf32>
    %c0_1 = arith.constant 0 : index
    %c0_2 = arith.constant 0 : index
    %1 = vector.load %arg2[%c0_1, %c0_2] : memref<1x128xf32, #tpu.memory_space<vmem>>, vector<1x128xf32>
    %2 = vector.broadcast %1 : vector<1x128xf32> to vector<32x128xf32>
    %3 = arith.mulf %0, %2 : vector<32x128xf32>
    %c0_3 = arith.constant 0 : index
    %c0_4 = arith.constant 0 : index
    %4 = vector.load %arg3[%c0_3, %c0_4] : memref<1x128xf32, #tpu.memory_space<vmem>>, vector<1x128xf32>
    %5 = vector.broadcast %4 : vector<1x128xf32> to vector<32x128xf32>
    %6 = arith.addf %3, %5 : vector<32x128xf32>
    %cst = arith.constant 0.000000e+00 : f32
    %7 = vector.broadcast %cst : f32 to vector<32x128xf32>
    %8 = arith.cmpf oge, %6, %7 : vector<32x128xf32>
    %cst_5 = arith.constant 2.000000e-01 : f32
    %9 = vector.broadcast %cst_5 : f32 to vector<32x128xf32>
    %10 = arith.mulf %9, %6 : vector<32x128xf32>
    %11 = arith.select %8, %6, %10 : vector<32x128xi1>, vector<32x128xf32>
    %12 = arith.truncf %11 : vector<32x128xf32> to vector<32x128xbf16>
    %c0_6 = arith.constant 0 : index
    %c0_7 = arith.constant 0 : index
    %13 = vector.load %arg4[%c0_6, %c0_7] : memref<32x128xbf16, #tpu.memory_space<vmem>>, vector<32x128xbf16>
    tpu.vector_store %arg4[%c0_6, %c0_7], %12 {strides = array<i32>} : memref<32x128xbf16, #tpu.memory_space<vmem>>, vector<32x128xbf16>,
    return
  }
  func.func @transform_0(%arg0: i32) -> (i32, i32) {
    %c0_i32 = arith.constant 0 : i32
    %c0_i32_0 = arith.constant 0 : i32
    return %arg0, %c0_i32 : i32, i32
  }
  func.func @transform_1(%arg0: i32) -> (i32, i32) {
    %c0_i32 = arith.constant 0 : i32
    %c0_i32_0 = arith.constant 0 : i32
    %c0_i32_1 = arith.constant 0 : i32
    return %c0_i32, %c0_i32_0 : i32, i32
  }
  func.func @transform_2(%arg0: i32) -> (i32, i32) {
    %c0_i32 = arith.constant 0 : i32
    %c0_i32_0 = arith.constant 0 : i32
    %c0_i32_1 = arith.constant 0 : i32
    return %c0_i32, %c0_i32_0 : i32, i32
  }
  func.func @transform_3(%arg0: i32) -> (i32, i32) {
    %c0_i32 = arith.constant 0 : i32
    %c0_i32_0 = arith.constant 0 : i32
    return %arg0, %c0_i32 : i32, i32
  }
}

module attributes {stable_mosaic.version = 11 : i64} {
  func.func @_head_kernel(%arg0: i32, %arg1: i32, %arg2: memref<16x128xbf16, #tpu.memory_space<vmem>>, %arg3: memref<128x256xbf16, #tpu.memory_space<vmem>>, %arg4: memref<1x256xf32, #tpu.memory_space<vmem>>, %arg5: memref<1x256xf32, #tpu.memory_space<vmem>>, %arg6: memref<1x1xf32, #tpu.memory_space<vmem>>, %arg7: memref<16x1xf32, #tpu.memory_space<vmem>>, %arg8: memref<16x256xf32, #tpu.memory_space<vmem>>) attributes {dimension_semantics = [#tpu.dimension_semantics<parallel>, #tpu.dimension_semantics<arbitrary>], iteration_bounds = array<i64: 1, 1>, scalar_prefetch = 0 : i64, scratch_operands = 1 : i64, tpu.core_type = #tpu.core_type<tc>, window_params = [{transform_indices = @transform_0, window_bounds = array<i64: 16, 128>}, {transform_indices = @transform_1, window_bounds = array<i64: 128, 256>}, {pipeline_mode = #tpu.pipeline_mode<synchronous>, transform_indices = @transform_2, window_bounds = array<i64: 1, 256>}, {pipeline_mode = #tpu.pipeline_mode<synchronous>, transform_indices = @transform_3, window_bounds = array<i64: 1, 256>}, {pipeline_mode = #tpu.pipeline_mode<synchronous>, transform_indices = @transform_4, window_bounds = array<i64: 1, 1>}, {transform_indices = @transform_5, window_bounds = array<i64: 16, 1>}]} {
    %c0_i32 = arith.constant 0 : i32
    %0 = arith.cmpi eq, %arg1, %c0_i32 : i32
    %1 = arith.extui %0 : i1 to i32
    %c0_i32_0 = arith.constant 0 : i32
    %2 = arith.cmpi ne, %1, %c0_i32_0 : i32
    scf.if %2 {
      %cst_10 = arith.constant 0.000000e+00 : f32
      %12 = vector.broadcast %cst_10 : f32 to vector<16x256xf32>
      %c0_11 = arith.constant 0 : index
      %c0_12 = arith.constant 0 : index
      %13 = vector.load %arg8[%c0_11, %c0_12] : memref<16x256xf32, #tpu.memory_space<vmem>>, vector<16x256xf32>
      tpu.vector_store %arg8[%c0_11, %c0_12], %12 {strides = array<i32>} : memref<16x256xf32, #tpu.memory_space<vmem>>, vector<16x256xf32>,
    } else {
    }
    %c0 = arith.constant 0 : index
    %c0_1 = arith.constant 0 : index
    %3 = vector.load %arg8[%c0, %c0_1] : memref<16x256xf32, #tpu.memory_space<vmem>>, vector<16x256xf32>
    %c0_2 = arith.constant 0 : index
    %c0_3 = arith.constant 0 : index
    %4 = vector.load %arg2[%c0_2, %c0_3] : memref<16x128xbf16, #tpu.memory_space<vmem>>, vector<16x128xbf16>
    %c0_4 = arith.constant 0 : index
    %c0_5 = arith.constant 0 : index
    %5 = vector.load %arg3[%c0_4, %c0_5] : memref<128x256xbf16, #tpu.memory_space<vmem>>, vector<128x256xbf16>
    %cst = arith.constant dense<0.000000e+00> : vector<16x256xf32>
    %6 = tpu.matmul %4, %5, %cst {dimension_numbers = #tpu.dot_dimension_numbers<[1], [0], [0], [1], [0, 0, 1, 1], [], []>} : vector<16x128xbf16>, vector<128x256xbf16>, vector<16x256xf32> -> vector<16x256xf32>
    %7 = arith.addf %3, %6 : vector<16x256xf32>
    %c0_6 = arith.constant 0 : index
    %c0_7 = arith.constant 0 : index
    %8 = vector.load %arg8[%c0_6, %c0_7] : memref<16x256xf32, #tpu.memory_space<vmem>>, vector<16x256xf32>
    tpu.vector_store %arg8[%c0_6, %c0_7], %7 {strides = array<i32>} : memref<16x256xf32, #tpu.memory_space<vmem>>, vector<16x256xf32>,
    %c0_i32_8 = arith.constant 0 : i32
    %9 = arith.cmpi eq, %arg1, %c0_i32_8 : i32
    %10 = arith.extui %9 : i1 to i32
    %c0_i32_9 = arith.constant 0 : i32
    %11 = arith.cmpi ne, %10, %c0_i32_9 : i32
    scf.if %11 {
      %c0_10 = arith.constant 0 : index
      %c0_11 = arith.constant 0 : index
      %12 = vector.load %arg8[%c0_10, %c0_11] : memref<16x256xf32, #tpu.memory_space<vmem>>, vector<16x256xf32>
      %c0_12 = arith.constant 0 : index
      %c0_13 = arith.constant 0 : index
      %13 = vector.load %arg4[%c0_12, %c0_13] : memref<1x256xf32, #tpu.memory_space<vmem>>, vector<1x256xf32>
      %14 = vector.broadcast %13 : vector<1x256xf32> to vector<16x256xf32>
      %15 = arith.addf %12, %14 : vector<16x256xf32>
      %cst_14 = arith.constant 0.000000e+00 : f32
      %16 = vector.broadcast %cst_14 : f32 to vector<16x256xf32>
      %17 = arith.cmpf oge, %15, %16 : vector<16x256xf32>
      %cst_15 = arith.constant 2.000000e-01 : f32
      %18 = vector.broadcast %cst_15 : f32 to vector<16x256xf32>
      %19 = arith.mulf %18, %15 : vector<16x256xf32>
      %20 = arith.select %17, %15, %19 : vector<16x256xi1>, vector<16x256xf32>
      %c0_16 = arith.constant 0 : index
      %c0_17 = arith.constant 0 : index
      %21 = vector.load %arg5[%c0_16, %c0_17] : memref<1x256xf32, #tpu.memory_space<vmem>>, vector<1x256xf32>
      %22 = vector.broadcast %21 : vector<1x256xf32> to vector<16x256xf32>
      %23 = arith.mulf %20, %22 : vector<16x256xf32>
      %cst_18 = arith.constant dense<0.000000e+00> : vector<16xf32>
      %24 = vector.multi_reduction <add>, %23, %cst_18 [1] : vector<16x256xf32> to vector<16xf32>
      %25 = vector.shape_cast %24 : vector<16xf32> to vector<16x1xf32>
      %c0_19 = arith.constant 0 : index
      %c0_20 = arith.constant 0 : index
      %26 = vector.load %arg6[%c0_19, %c0_20] : memref<1x1xf32, #tpu.memory_space<vmem>>, vector<1x1xf32>
      %27 = vector.broadcast %26 : vector<1x1xf32> to vector<16x1xf32>
      %28 = arith.addf %25, %27 : vector<16x1xf32>
      %c0_21 = arith.constant 0 : index
      %c0_22 = arith.constant 0 : index
      %29 = vector.load %arg7[%c0_21, %c0_22] : memref<16x1xf32, #tpu.memory_space<vmem>>, vector<16x1xf32>
      tpu.vector_store %arg7[%c0_21, %c0_22], %28 {strides = array<i32>} : memref<16x1xf32, #tpu.memory_space<vmem>>, vector<16x1xf32>,
    } else {
    }
    return
  }
  func.func @transform_0(%arg0: i32, %arg1: i32) -> (i32, i32) {
    %c0_i32 = arith.constant 0 : i32
    return %arg0, %arg1 : i32, i32
  }
  func.func @transform_1(%arg0: i32, %arg1: i32) -> (i32, i32) {
    %c0_i32 = arith.constant 0 : i32
    %c0_i32_0 = arith.constant 0 : i32
    return %arg1, %c0_i32 : i32, i32
  }
  func.func @transform_2(%arg0: i32, %arg1: i32) -> (i32, i32) {
    %c0_i32 = arith.constant 0 : i32
    %c0_i32_0 = arith.constant 0 : i32
    %c0_i32_1 = arith.constant 0 : i32
    return %c0_i32, %c0_i32_0 : i32, i32
  }
  func.func @transform_3(%arg0: i32, %arg1: i32) -> (i32, i32) {
    %c0_i32 = arith.constant 0 : i32
    %c0_i32_0 = arith.constant 0 : i32
    %c0_i32_1 = arith.constant 0 : i32
    return %c0_i32, %c0_i32_0 : i32, i32
  }
  func.func @transform_4(%arg0: i32, %arg1: i32) -> (i32, i32) {
    %c0_i32 = arith.constant 0 : i32
    %c0_i32_0 = arith.constant 0 : i32
    %c0_i32_1 = arith.constant 0 : i32
    return %c0_i32, %c0_i32_0 : i32, i32
  }
  func.func @transform_5(%arg0: i32, %arg1: i32) -> (i32, i32) {
    %c0_i32 = arith.constant 0 : i32
    %c0_i32_0 = arith.constant 0 : i32
    return %arg0, %c0_i32 : i32, i32
  }
}

module attributes {stable_mosaic.version = 11 : i64} {
  func.func @_conv_gemm_stats_kernel(%arg0: i32, %arg1: i32, %arg2: memref<32x256xbf16, #tpu.memory_space<vmem>>, %arg3: memref<256x128xbf16, #tpu.memory_space<vmem>>, %arg4: memref<32x128xf32, #tpu.memory_space<vmem>>, %arg5: memref<1x1x128xf32, #tpu.memory_space<vmem>>, %arg6: memref<1x1x128xf32, #tpu.memory_space<vmem>>, %arg7: memref<32x128xf32, #tpu.memory_space<vmem>>) attributes {dimension_semantics = [#tpu.dimension_semantics<parallel>, #tpu.dimension_semantics<arbitrary>], iteration_bounds = array<i64: 1, 1>, scalar_prefetch = 0 : i64, scratch_operands = 1 : i64, tpu.core_type = #tpu.core_type<tc>, window_params = [{transform_indices = @transform_0, window_bounds = array<i64: 32, 256>}, {transform_indices = @transform_1, window_bounds = array<i64: 256, 128>}, {transform_indices = @transform_2, window_bounds = array<i64: 32, 128>}, {transform_indices = @transform_3, window_bounds = array<i64: 1, 1, 128>}, {transform_indices = @transform_4, window_bounds = array<i64: 1, 1, 128>}]} {
    %c0_i32 = arith.constant 0 : i32
    %0 = arith.cmpi eq, %arg1, %c0_i32 : i32
    %1 = arith.extui %0 : i1 to i32
    %c0_i32_0 = arith.constant 0 : i32
    %2 = arith.cmpi ne, %1, %c0_i32_0 : i32
    scf.if %2 {
      %cst_10 = arith.constant 0.000000e+00 : f32
      %12 = vector.broadcast %cst_10 : f32 to vector<32x128xf32>
      %c0_11 = arith.constant 0 : index
      %c0_12 = arith.constant 0 : index
      %13 = vector.load %arg7[%c0_11, %c0_12] : memref<32x128xf32, #tpu.memory_space<vmem>>, vector<32x128xf32>
      tpu.vector_store %arg7[%c0_11, %c0_12], %12 {strides = array<i32>} : memref<32x128xf32, #tpu.memory_space<vmem>>, vector<32x128xf32>,
    } else {
    }
    %c0 = arith.constant 0 : index
    %c0_1 = arith.constant 0 : index
    %3 = vector.load %arg7[%c0, %c0_1] : memref<32x128xf32, #tpu.memory_space<vmem>>, vector<32x128xf32>
    %c0_2 = arith.constant 0 : index
    %c0_3 = arith.constant 0 : index
    %4 = vector.load %arg2[%c0_2, %c0_3] : memref<32x256xbf16, #tpu.memory_space<vmem>>, vector<32x256xbf16>
    %c0_4 = arith.constant 0 : index
    %c0_5 = arith.constant 0 : index
    %5 = vector.load %arg3[%c0_4, %c0_5] : memref<256x128xbf16, #tpu.memory_space<vmem>>, vector<256x128xbf16>
    %cst = arith.constant dense<0.000000e+00> : vector<32x128xf32>
    %6 = tpu.matmul %4, %5, %cst {dimension_numbers = #tpu.dot_dimension_numbers<[1], [0], [0], [1], [0, 0, 1, 1], [], []>} : vector<32x256xbf16>, vector<256x128xbf16>, vector<32x128xf32> -> vector<32x128xf32>
    %7 = arith.addf %3, %6 : vector<32x128xf32>
    %c0_6 = arith.constant 0 : index
    %c0_7 = arith.constant 0 : index
    %8 = vector.load %arg7[%c0_6, %c0_7] : memref<32x128xf32, #tpu.memory_space<vmem>>, vector<32x128xf32>
    tpu.vector_store %arg7[%c0_6, %c0_7], %7 {strides = array<i32>} : memref<32x128xf32, #tpu.memory_space<vmem>>, vector<32x128xf32>,
    %c0_i32_8 = arith.constant 0 : i32
    %9 = arith.cmpi eq, %arg1, %c0_i32_8 : i32
    %10 = arith.extui %9 : i1 to i32
    %c0_i32_9 = arith.constant 0 : i32
    %11 = arith.cmpi ne, %10, %c0_i32_9 : i32
    scf.if %11 {
      %c0_10 = arith.constant 0 : index
      %c0_11 = arith.constant 0 : index
      %12 = vector.load %arg7[%c0_10, %c0_11] : memref<32x128xf32, #tpu.memory_space<vmem>>, vector<32x128xf32>
      %c0_12 = arith.constant 0 : index
      %c0_13 = arith.constant 0 : index
      %13 = vector.load %arg4[%c0_12, %c0_13] : memref<32x128xf32, #tpu.memory_space<vmem>>, vector<32x128xf32>
      tpu.vector_store %arg4[%c0_12, %c0_13], %12 {strides = array<i32>} : memref<32x128xf32, #tpu.memory_space<vmem>>, vector<32x128xf32>,
      %cst_14 = arith.constant dense<0.000000e+00> : vector<128xf32>
      %14 = vector.multi_reduction <add>, %12, %cst_14 [0] : vector<32x128xf32> to vector<128xf32>
      %15 = vector.shape_cast %14 : vector<128xf32> to vector<1x128xf32>
      %16 = vector.shape_cast %15 : vector<1x128xf32> to vector<1x1x128xf32>
      %c0_15 = arith.constant 0 : index
      %c0_16 = arith.constant 0 : index
      %c0_17 = arith.constant 0 : index
      %17 = vector.load %arg5[%c0_15, %c0_16, %c0_17] : memref<1x1x128xf32, #tpu.memory_space<vmem>>, vector<1x1x128xf32>
      tpu.vector_store %arg5[%c0_15, %c0_16, %c0_17], %16 {strides = array<i32>} : memref<1x1x128xf32, #tpu.memory_space<vmem>>, vector<1x1x128xf32>,
      %18 = arith.mulf %12, %12 : vector<32x128xf32>
      %cst_18 = arith.constant dense<0.000000e+00> : vector<128xf32>
      %19 = vector.multi_reduction <add>, %18, %cst_18 [0] : vector<32x128xf32> to vector<128xf32>
      %20 = vector.shape_cast %19 : vector<128xf32> to vector<1x128xf32>
      %21 = vector.shape_cast %20 : vector<1x128xf32> to vector<1x1x128xf32>
      %c0_19 = arith.constant 0 : index
      %c0_20 = arith.constant 0 : index
      %c0_21 = arith.constant 0 : index
      %22 = vector.load %arg6[%c0_19, %c0_20, %c0_21] : memref<1x1x128xf32, #tpu.memory_space<vmem>>, vector<1x1x128xf32>
      tpu.vector_store %arg6[%c0_19, %c0_20, %c0_21], %21 {strides = array<i32>} : memref<1x1x128xf32, #tpu.memory_space<vmem>>, vector<1x1x128xf32>,
    } else {
    }
    return
  }
  func.func @transform_0(%arg0: i32, %arg1: i32) -> (i32, i32) {
    %c0_i32 = arith.constant 0 : i32
    return %arg0, %arg1 : i32, i32
  }
  func.func @transform_1(%arg0: i32, %arg1: i32) -> (i32, i32) {
    %c0_i32 = arith.constant 0 : i32
    %c0_i32_0 = arith.constant 0 : i32
    return %arg1, %c0_i32 : i32, i32
  }
  func.func @transform_2(%arg0: i32, %arg1: i32) -> (i32, i32) {
    %c0_i32 = arith.constant 0 : i32
    %c0_i32_0 = arith.constant 0 : i32
    return %arg0, %c0_i32 : i32, i32
  }
  func.func @transform_3(%arg0: i32, %arg1: i32) -> (i32, i32, i32) {
    %c0_i32 = arith.constant 0 : i32
    %c0_i32_0 = arith.constant 0 : i32
    %c0_i32_1 = arith.constant 0 : i32
    return %arg0, %c0_i32, %c0_i32_0 : i32, i32, i32
  }
  func.func @transform_4(%arg0: i32, %arg1: i32) -> (i32, i32, i32) {
    %c0_i32 = arith.constant 0 : i32
    %c0_i32_0 = arith.constant 0 : i32
    %c0_i32_1 = arith.constant 0 : i32
    return %arg0, %c0_i32, %c0_i32_0 : i32, i32, i32
  }
}

</mosaic_0001>

<llo_original>
// kernel: vision_discriminator_forward.8
$region0: #{vision_discriminator_forward.8}
  #allocation0 [shape = 'u32[]', space=smem, size = 0x4, offset = 0x4, fixed_abs, tag = 'smem constant byte address 0x4 - core index']
  #allocation1 [shape = 'u32[72,128]{1,0:T(1,128)}', space=vmem, size = 0x9000, scoped, tag = 'internal scratch']
  %s0 = inlined_call_operand.vmem [shape: f32[128,128], index: 0, kind: input, shape index: {}]
  %s1 = inlined_call_operand.vmem [shape: f32[1,128], index: 1, kind: input, shape index: {}]
  %s2 = inlined_call_operand.vmem [shape: f32[1,128], index: 2, kind: input, shape index: {}]
  %s3 = inlined_call_operand.vmem [shape: bf16[128,128], index: 3, kind: output, shape index: {}]
  %s4 = sld [smem:[#allocation0]]
  $region22: #{vision_discriminator_forward.8} parent=0
    _
  %s6 = ssub.s32 1, %s4
  %s7 = scalar_select 0, %s6, %s4
  // Predicated region
  $region2: #{vision_discriminator_forward.8} parent=0 // pred_check
    _
  $region3: #{vision_discriminator_forward.8} parent=0 // pred_check_branch
    %9 = sbr.rel (0) target = $region5
  $region4: #{vision_discriminator_forward.8} parent=0 // pred_region
    _
  $region5: #{vision_discriminator_forward.8} parent=0 // pred_fallthru
    _
  // Predicated region
  $region6: #{vision_discriminator_forward.8} parent=0 // pred_check
    _
  $region7: #{vision_discriminator_forward.8} parent=0 // pred_check_branch
    %11 = sbr.rel (0) target = $region9
  $region8: #{vision_discriminator_forward.8} parent=0 // pred_region
    _
  $region9: #{vision_discriminator_forward.8} parent=0 // pred_fallthru
    _
  // Predicated region
  $region10: #{vision_discriminator_forward.8} parent=0 // pred_check
    _
  $region11: #{vision_discriminator_forward.8} parent=0 // pred_check_branch
    %13 = sbr.rel (0) target = $region13
  $region12: #{vision_discriminator_forward.8} parent=0 // pred_region
    _
  $region13: #{vision_discriminator_forward.8} parent=0 // pred_fallthru
    _
  %v14 = vld [vmem:[%s0] sm:$0xff]
  %v15 = vld [vmem:[%s0 + $0x8] sm:$0xff]
  %v16 = vld [vmem:[%s0 + $0x10] sm:$0xff]
  %v17 = vld [vmem:[%s0 + $0x18] sm:$0xff]
  %v18 = vld [vmem:[%s0 + $0x20] sm:$0xff]
  %v19 = vld [vmem:[%s0 + $0x28] sm:$0xff]
  %v20 = vld [vmem:[%s0 + $0x30] sm:$0xff]
  %v21 = vld [vmem:[%s0 + $0x38] sm:$0xff]
  %v22 = vld [vmem:[%s0 + $0x40] sm:$0xff]
  %v23 = vld [vmem:[%s0 + $0x48] sm:$0xff]
  %v24 = vld [vmem:[%s0 + $0x50] sm:$0xff]
  %v25 = vld [vmem:[%s0 + $0x58] sm:$0xff]
  %v26 = vld [vmem:[%s0 + $0x60] sm:$0xff]
  %v27 = vld [vmem:[%s0 + $0x68] sm:$0xff]
  %v28 = vld [vmem:[%s0 + $0x70] sm:$0xff]
  %v29 = vld [vmem:[%s0 + $0x78] sm:$0xff]
  %v30 = vld [vmem:[%s1] sm:$0x1]
  %v32 = vperm.slane %v30, 0
  %v34 = vmul.f32 %v14, %v32
  %v35 = vmul.f32 %v15, %v32
  %v36 = vmul.f32 %v16, %v32
  %v37 = vmul.f32 %v17, %v32
  %v38 = vmul.f32 %v18, %v32
  %v39 = vmul.f32 %v19, %v32
  %v40 = vmul.f32 %v20, %v32
  %v41 = vmul.f32 %v21, %v32
  %v42 = vmul.f32 %v22, %v32
  %v43 = vmul.f32 %v23, %v32
  %v44 = vmul.f32 %v24, %v32
  %v45 = vmul.f32 %v25, %v32
  %v46 = vmul.f32 %v26, %v32
  %v47 = vmul.f32 %v27, %v32
  %v48 = vmul.f32 %v28, %v32
  %v49 = vmul.f32 %v29, %v32
  %v50 = vld [vmem:[%s2] sm:$0x1]
  %v52 = vperm.slane %v50, 0
  %v54 = vadd.f32 %v34, %v52
  %v55 = vadd.f32 %v35, %v52
  %v56 = vadd.f32 %v36, %v52
  %v57 = vadd.f32 %v37, %v52
  %v58 = vadd.f32 %v38, %v52
  %v59 = vadd.f32 %v39, %v52
  %v60 = vadd.f32 %v40, %v52
  %v61 = vadd.f32 %v41, %v52
  %v62 = vadd.f32 %v42, %v52
  %v63 = vadd.f32 %v43, %v52
  %v64 = vadd.f32 %v44, %v52
  %v65 = vadd.f32 %v45, %v52
  %v66 = vadd.f32 %v46, %v52
  %v67 = vadd.f32 %v47, %v52
  %v68 = vadd.f32 %v48, %v52
  %v69 = vadd.f32 %v49, %v52
  %vm70 = vcmp.ge.f32.partialorder %v54, 0.0
  %vm71 = vcmp.ge.f32.partialorder %v55, 0.0
  %vm72 = vcmp.ge.f32.partialorder %v56, 0.0
  %vm73 = vcmp.ge.f32.partialorder %v57, 0.0
  %vm74 = vcmp.ge.f32.partialorder %v58, 0.0
  %vm75 = vcmp.ge.f32.partialorder %v59, 0.0
  %vm76 = vcmp.ge.f32.partialorder %v60, 0.0
  %vm77 = vcmp.ge.f32.partialorder %v61, 0.0
  %vm78 = vcmp.ge.f32.partialorder %v62, 0.0
  %vm79 = vcmp.ge.f32.partialorder %v63, 0.0
  %vm80 = vcmp.ge.f32.partialorder %v64, 0.0
  %vm81 = vcmp.ge.f32.partialorder %v65, 0.0
  %vm82 = vcmp.ge.f32.partialorder %v66, 0.0
  %vm83 = vcmp.ge.f32.partialorder %v67, 0.0
  %vm84 = vcmp.ge.f32.partialorder %v68, 0.0
  %vm85 = vcmp.ge.f32.partialorder %v69, 0.0
  %v86 = vmul.f32 %v54, 0.2
  %v87 = vmul.f32 %v55, 0.2
  %v88 = vmul.f32 %v56, 0.2
  %v89 = vmul.f32 %v57, 0.2
  %v90 = vmul.f32 %v58, 0.2
  %v91 = vmul.f32 %v59, 0.2
  %v92 = vmul.f32 %v60, 0.2
  %v93 = vmul.f32 %v61, 0.2
  %v94 = vmul.f32 %v62, 0.2
  %v95 = vmul.f32 %v63, 0.2
  %v96 = vmul.f32 %v64, 0.2
  %v97 = vmul.f32 %v65, 0.2
  %v98 = vmul.f32 %v66, 0.2
  %v99 = vmul.f32 %v67, 0.2
  %v100 = vmul.f32 %v68, 0.2
  %v101 = vmul.f32 %v69, 0.2
  %v102 = vsel %vm70, %v54, %v86
  %v103 = vsel %vm71, %v55, %v87
  %v104 = vsel %vm72, %v56, %v88
  %v105 = vsel %vm73, %v57, %v89
  %v106 = vsel %vm74, %v58, %v90
  %v107 = vsel %vm75, %v59, %v91
  %v108 = vsel %vm76, %v60, %v92
  %v109 = vsel %vm77, %v61, %v93
  %v110 = vsel %vm78, %v62, %v94
  %v111 = vsel %vm79, %v63, %v95
  %v112 = vsel %vm80, %v64, %v96
  %v113 = vsel %vm81, %v65, %v97
  %v114 = vsel %vm82, %v66, %v98
  %v115 = vsel %vm83, %v67, %v99
  %v116 = vsel %vm84, %v68, %v100
  %v117 = vsel %vm85, %v69, %v101
  %v118 = vpack.c.bf16 %v102, %v102
  %v119 = vpack.c.bf16 %v103, %v103
  %v120 = vpack.c.bf16 %v104, %v104
  %v121 = vpack.c.bf16 %v105, %v105
  %v122 = vpack.c.bf16 %v106, %v106
  %v123 = vpack.c.bf16 %v107, %v107
  %v124 = vpack.c.bf16 %v108, %v108
  %v125 = vpack.c.bf16 %v109, %v109
  %v126 = vpack.c.bf16 %v110, %v110
  %v127 = vpack.c.bf16 %v111, %v111
  %v128 = vpack.c.bf16 %v112, %v112
  %v129 = vpack.c.bf16 %v113, %v113
  %v130 = vpack.c.bf16 %v114, %v114
  %v131 = vpack.c.bf16 %v115, %v115
  %v132 = vpack.c.bf16 %v116, %v116
  %v133 = vpack.c.bf16 %v117, %v117
  %134 = vst [vmem:[%s3] sm:$0xf] %v118
  %135 = vst [vmem:[%s3 + $0x4] sm:$0xf] %v119
  %136 = vst [vmem:[%s3 + $0x8] sm:$0xf] %v120
  %137 = vst [vmem:[%s3 + $0xc] sm:$0xf] %v121
  %138 = vst [vmem:[%s3 + $0x10] sm:$0xf] %v122
  %139 = vst [vmem:[%s3 + $0x14] sm:$0xf] %v123
  %140 = vst [vmem:[%s3 + $0x18] sm:$0xf] %v124
  %141 = vst [vmem:[%s3 + $0x1c] sm:$0xf] %v125
  %142 = vst [vmem:[%s3 + $0x20] sm:$0xf] %v126
  %143 = vst [vmem:[%s3 + $0x24] sm:$0xf] %v127
  %144 = vst [vmem:[%s3 + $0x28] sm:$0xf] %v128
  %145 = vst [vmem:[%s3 + $0x2c] sm:$0xf] %v129
  %146 = vst [vmem:[%s3 + $0x30] sm:$0xf] %v130
  %147 = vst [vmem:[%s3 + $0x34] sm:$0xf] %v131
  %148 = vst [vmem:[%s3 + $0x38] sm:$0xf] %v132
  %149 = vst [vmem:[%s3 + $0x3c] sm:$0xf] %v133
  // Predicated region
  $region14: #{vision_discriminator_forward.8} parent=0 // pred_check
    _
  $region15: #{vision_discriminator_forward.8} parent=0 // pred_check_branch
    %151 = sbr.rel (0) target = $region17
  $region16: #{vision_discriminator_forward.8} parent=0 // pred_region
    _
  $region17: #{vision_discriminator_forward.8} parent=0 // pred_fallthru
    _
  // Predicated region
  $region18: #{vision_discriminator_forward.8} parent=0 // pred_check
    _
  $region19: #{vision_discriminator_forward.8} parent=0 // pred_check_branch
    %153 = sbr.rel (0) target = $region21
  $region20: #{vision_discriminator_forward.8} parent=0 // pred_region
    _
  $region21: #{vision_discriminator_forward.8} parent=0 // pred_fallthru
    _

// kernel: vision_discriminator_forward.7
$region0: #{vision_discriminator_forward.7}
  #allocation0 [shape = 'u32[]', space=smem, size = 0x4, offset = 0x4, fixed_abs, tag = 'smem constant byte address 0x4 - core index']
  #allocation1 [shape = 'u32[72,128]{1,0:T(1,128)}', space=vmem, size = 0x9000, scoped, tag = 'internal scratch']
  #allocation2 [shape = 'f32[128,128]{1,0:T(8,128)}', space=vmem, size = 0x10000, scoped, tag = 'scratch operand']
  %s0 = inlined_call_operand.vmem [shape: bf16[128,128], index: 0, kind: input, shape index: {}]
  %s1 = inlined_call_operand.vmem [shape: bf16[128,128], index: 1, kind: input, shape index: {}]
  %s2 = inlined_call_operand.vmem [shape: f32[128,128], index: 2, kind: output, shape index: {0}]
  %s3 = inlined_call_operand.vmem [shape: f32[1,1,128], index: 3, kind: output, shape index: {1}]
  %s4 = inlined_call_operand.vmem [shape: f32[1,1,128], index: 4, kind: output, shape index: {2}]
  %5 = xla_tuple %s2, %s3, %s4
  %s6 = sld [smem:[#allocation0]]
  $region42: #{vision_discriminator_forward.7} parent=0
    _
  %s8 = ssub.s32 1, %s6
  %s9 = scalar_select 0, %s8, %s6
  // Predicated region
  $region2: #{vision_discriminator_forward.7} parent=0 // pred_check
    _
  $region3: #{vision_discriminator_forward.7} parent=0 // pred_check_branch
    %11 = sbr.rel (0) target = $region5
  $region4: #{vision_discriminator_forward.7} parent=0 // pred_region
    _
  $region5: #{vision_discriminator_forward.7} parent=0 // pred_fallthru
    _
  // Predicated region
  $region6: #{vision_discriminator_forward.7} parent=0 // pred_check
    _
  $region7: #{vision_discriminator_forward.7} parent=0 // pred_check_branch
    %13 = sbr.rel (0) target = $region9
  $region8: #{vision_discriminator_forward.7} parent=0 // pred_region
    _
  $region9: #{vision_discriminator_forward.7} parent=0 // pred_fallthru
    _
  %p14 = scmp.eq.s32.totalorder 0, 0
  // Predicated region
  $region10: #{vision_discriminator_forward.7} parent=0 // pred_check
    %p15 = pneg %p14
  $region11: #{vision_discriminator_forward.7} parent=0 // pred_check_branch
    %17 = sbr.rel (%p15) target = $region13
  $region12: #{vision_discriminator_forward.7} parent=0 // pred_region
    %18 = vst [vmem:[#allocation2] sm:$0xff] 0.0
    %19 = vst [vmem:[#allocation2 + $0x8] sm:$0xff] 0.0
    %20 = vst [vmem:[#allocation2 + $0x10] sm:$0xff] 0.0
    %21 = vst [vmem:[#allocation2 + $0x18] sm:$0xff] 0.0
    %22 = vst [vmem:[#allocation2 + $0x20] sm:$0xff] 0.0
    %23 = vst [vmem:[#allocation2 + $0x28] sm:$0xff] 0.0
    %24 = vst [vmem:[#allocation2 + $0x30] sm:$0xff] 0.0
    %25 = vst [vmem:[#allocation2 + $0x38] sm:$0xff] 0.0
    %26 = vst [vmem:[#allocation2 + $0x40] sm:$0xff] 0.0
    %27 = vst [vmem:[#allocation2 + $0x48] sm:$0xff] 0.0
    %28 = vst [vmem:[#allocation2 + $0x50] sm:$0xff] 0.0
    %29 = vst [vmem:[#allocation2 + $0x58] sm:$0xff] 0.0
    %30 = vst [vmem:[#allocation2 + $0x60] sm:$0xff] 0.0
    %31 = vst [vmem:[#allocation2 + $0x68] sm:$0xff] 0.0
    %32 = vst [vmem:[#allocation2 + $0x70] sm:$0xff] 0.0
    %33 = vst [vmem:[#allocation2 + $0x78] sm:$0xff] 0.0
  $region13: #{vision_discriminator_forward.7} parent=0 // pred_fallthru
    _
  %v34 = vld [vmem:[#allocation2] sm:$0xff]
  %v35 = vld [vmem:[#allocation2 + $0x8] sm:$0xff]
  %v36 = vld [vmem:[#allocation2 + $0x10] sm:$0xff]
  %v37 = vld [vmem:[#allocation2 + $0x18] sm:$0xff]
  %v38 = vld [vmem:[#allocation2 + $0x20] sm:$0xff]
  %v39 = vld [vmem:[#allocation2 + $0x28] sm:$0xff]
  %v40 = vld [vmem:[#allocation2 + $0x30] sm:$0xff]
  %v41 = vld [vmem:[#allocation2 + $0x38] sm:$0xff]
  %v42 = vld [vmem:[#allocation2 + $0x40] sm:$0xff]
  %v43 = vld [vmem:[#allocation2 + $0x48] sm:$0xff]
  %v44 = vld [vmem:[#allocation2 + $0x50] sm:$0xff]
  %v45 = vld [vmem:[#allocation2 + $0x58] sm:$0xff]
  %v46 = vld [vmem:[#allocation2 + $0x60] sm:$0xff]
  %v47 = vld [vmem:[#allocation2 + $0x68] sm:$0xff]
  %v48 = vld [vmem:[#allocation2 + $0x70] sm:$0xff]
  %v49 = vld [vmem:[#allocation2 + $0x78] sm:$0xff]
  %v50 = vld [vmem:[%s0] sm:$0xf]
  %v51 = vld [vmem:[%s0 + $0x4] sm:$0xf]
  %v52 = vld [vmem:[%s0 + $0x8] sm:$0xf]
  %v53 = vld [vmem:[%s0 + $0xc] sm:$0xf]
  %v54 = vld [vmem:[%s0 + $0x10] sm:$0xf]
  %v55 = vld [vmem:[%s0 + $0x14] sm:$0xf]
  %v56 = vld [vmem:[%s0 + $0x18] sm:$0xf]
  %v57 = vld [vmem:[%s0 + $0x1c] sm:$0xf]
  %v58 = vld [vmem:[%s0 + $0x20] sm:$0xf]
  %v59 = vld [vmem:[%s0 + $0x24] sm:$0xf]
  %v60 = vld [vmem:[%s0 + $0x28] sm:$0xf]
  %v61 = vld [vmem:[%s0 + $0x2c] sm:$0xf]
  %v62 = vld [vmem:[%s0 + $0x30] sm:$0xf]
  %v63 = vld [vmem:[%s0 + $0x34] sm:$0xf]
  %v64 = vld [vmem:[%s0 + $0x38] sm:$0xf]
  %v65 = vld [vmem:[%s0 + $0x3c] sm:$0xf]
  %v66 = vld [vmem:[%s1] sm:$0xf]
  %v67 = vld [vmem:[%s1 + $0x4] sm:$0xf]
  %v68 = vld [vmem:[%s1 + $0x8] sm:$0xf]
  %v69 = vld [vmem:[%s1 + $0xc] sm:$0xf]
  %v70 = vld [vmem:[%s1 + $0x10] sm:$0xf]
  %v71 = vld [vmem:[%s1 + $0x14] sm:$0xf]
  %v72 = vld [vmem:[%s1 + $0x18] sm:$0xf]
  %v73 = vld [vmem:[%s1 + $0x1c] sm:$0xf]
  %v74 = vld [vmem:[%s1 + $0x20] sm:$0xf]
  %v75 = vld [vmem:[%s1 + $0x24] sm:$0xf]
  %v76 = vld [vmem:[%s1 + $0x28] sm:$0xf]
  %v77 = vld [vmem:[%s1 + $0x2c] sm:$0xf]
  %v78 = vld [vmem:[%s1 + $0x30] sm:$0xf]
  %v79 = vld [vmem:[%s1 + $0x34] sm:$0xf]
  %v80 = vld [vmem:[%s1 + $0x38] sm:$0xf]
  %v81 = vld [vmem:[%s1 + $0x3c] sm:$0xf]
  %v98 = vunpack.c.l.b16 %v50
  %v99 = vunpack.c.l.b16 %v51
  %v100 = vunpack.c.l.b16 %v52
  %v101 = vunpack.c.l.b16 %v53
  %v102 = vunpack.c.l.b16 %v54
  %v103 = vunpack.c.l.b16 %v55
  %v104 = vunpack.c.l.b16 %v56
  %v105 = vunpack.c.l.b16 %v57
  %v106 = vunpack.c.l.b16 %v58
  %v107 = vunpack.c.l.b16 %v59
  %v108 = vunpack.c.l.b16 %v60
  %v109 = vunpack.c.l.b16 %v61
  %v110 = vunpack.c.l.b16 %v62
  %v111 = vunpack.c.l.b16 %v63
  %v112 = vunpack.c.l.b16 %v64
  %v113 = vunpack.c.l.b16 %v65
  %v114 = vpack.c.b16 %v99, %v98
  %v115 = vpack.c.b16 %v101, %v100
  %v116 = vpack.c.b16 %v103, %v102
  %v117 = vpack.c.b16 %v105, %v104
  %v118 = vpack.c.b16 %v107, %v106
  %v119 = vpack.c.b16 %v109, %v108
  %v120 = vpack.c.b16 %v111, %v110
  %v121 = vpack.c.b16 %v113, %v112
  %v146 = vunpack.c.l.b16 %v66
  %v147 = vunpack.c.l.b16 %v67
  %v148 = vunpack.c.l.b16 %v68
  %v149 = vunpack.c.l.b16 %v69
  %v150 = vunpack.c.l.b16 %v70
  %v151 = vunpack.c.l.b16 %v71
  %v152 = vunpack.c.l.b16 %v72
  %v153 = vunpack.c.l.b16 %v73
  %v154 = vunpack.c.l.b16 %v74
  %v155 = vunpack.c.l.b16 %v75
  %v156 = vunpack.c.l.b16 %v76
  %v157 = vunpack.c.l.b16 %v77
  %v158 = vunpack.c.l.b16 %v78
  %v159 = vunpack.c.l.b16 %v79
  %v160 = vunpack.c.l.b16 %v80
  %v161 = vunpack.c.l.b16 %v81
  %v162 = vpack.c.b16 %v147, %v146
  %v163 = vpack.c.b16 %v149, %v148
  %v164 = vpack.c.b16 %v151, %v150
  %v165 = vpack.c.b16 %v153, %v152
  %v166 = vpack.c.b16 %v155, %v154
  %v167 = vpack.c.b16 %v157, %v156
  %v168 = vpack.c.b16 %v159, %v158
  %v169 = vpack.c.b16 %v161, %v160
  %178 = vmatpush.bf16.msra.mxu0 %v169
  %179 = vmatpush.bf16.msra.mxu0 %v168
  %180 = vmatpush.bf16.msra.mxu0 %v167
  %181 = vmatpush.bf16.msra.mxu0 %v166
  %182 = vmatpush.bf16.msra.mxu0 %v165
  %183 = vmatpush.bf16.msra.mxu0 %v164
  %184 = vmatpush.bf16.msra.mxu0 %v163
  %185 = vmatpush.bf16.msra.mxu0 %v162
  %186 = vmatmul.bf16.gmra.mxu0 %v114
  %v187 = vpop.f32.mrf.mxu0
  %v188 = vadd.f32 0.0, %v187
  %v189 = vpop.f32.mrf.mxu0
  %v190 = vadd.f32 0.0, %v189
  %191 = vmatmul.bf16.gmra.mxu0 %v115
  %v192 = vpop.f32.mrf.mxu0
  %v193 = vadd.f32 0.0, %v192
  %v194 = vpop.f32.mrf.mxu0
  %v195 = vadd.f32 0.0, %v194
  %196 = vmatmul.bf16.gmra.mxu0 %v116
  %v197 = vpop.f32.mrf.mxu0
  %v198 = vadd.f32 0.0, %v197
  %v199 = vpop.f32.mrf.mxu0
  %v200 = vadd.f32 0.0, %v199
  %201 = vmatmul.bf16.gmra.mxu0 %v117
  %v202 = vpop.f32.mrf.mxu0
  %v203 = vadd.f32 0.0, %v202
  %v204 = vpop.f32.mrf.mxu0
  %v205 = vadd.f32 0.0, %v204
  %206 = vmatmul.bf16.gmra.mxu0 %v118
  %v207 = vpop.f32.mrf.mxu0
  %v208 = vadd.f32 0.0, %v207
  %v209 = vpop.f32.mrf.mxu0
  %v210 = vadd.f32 0.0, %v209
  %211 = vmatmul.bf16.gmra.mxu0 %v119
  %v212 = vpop.f32.mrf.mxu0
  %v213 = vadd.f32 0.0, %v212
  %v214 = vpop.f32.mrf.mxu0
  %v215 = vadd.f32 0.0, %v214
  %216 = vmatmul.bf16.gmra.mxu0 %v120
  %v217 = vpop.f32.mrf.mxu0
  %v218 = vadd.f32 0.0, %v217
  %v219 = vpop.f32.mrf.mxu0
  %v220 = vadd.f32 0.0, %v219
  %221 = vmatmul.bf16.gmra.mxu0 %v121
  %v222 = vpop.f32.mrf.mxu0
  %v223 = vadd.f32 0.0, %v222
  %v224 = vpop.f32.mrf.mxu0
  %v225 = vadd.f32 0.0, %v224
  %226 = vdwg.mxu0
  %v227 = vadd.f32 %v34, %v188
  %v228 = vadd.f32 %v35, %v190
  %v229 = vadd.f32 %v36, %v193
  %v230 = vadd.f32 %v37, %v195
  %v231 = vadd.f32 %v38, %v198
  %v232 = vadd.f32 %v39, %v200
  %v233 = vadd.f32 %v40, %v203
  %v234 = vadd.f32 %v41, %v205
  %v235 = vadd.f32 %v42, %v208
  %v236 = vadd.f32 %v43, %v210
  %v237 = vadd.f32 %v44, %v213
  %v238 = vadd.f32 %v45, %v215
  %v239 = vadd.f32 %v46, %v218
  %v240 = vadd.f32 %v47, %v220
  %v241 = vadd.f32 %v48, %v223
  %v242 = vadd.f32 %v49, %v225
  %243 = vst [vmem:[#allocation2] sm:$0xff] %v227
  %244 = vst [vmem:[#allocation2 + $0x8] sm:$0xff] %v228
  %245 = vst [vmem:[#allocation2 + $0x10] sm:$0xff] %v229
  %246 = vst [vmem:[#allocation2 + $0x18] sm:$0xff] %v230
  %247 = vst [vmem:[#allocation2 + $0x20] sm:$0xff] %v231
  %248 = vst [vmem:[#allocation2 + $0x28] sm:$0xff] %v232
  %249 = vst [vmem:[#allocation2 + $0x30] sm:$0xff] %v233
  %250 = vst [vmem:[#allocation2 + $0x38] sm:$0xff] %v234
  %251 = vst [vmem:[#allocation2 + $0x40] sm:$0xff] %v235
  %252 = vst [vmem:[#allocation2 + $0x48] sm:$0xff] %v236
  %253 = vst [vmem:[#allocation2 + $0x50] sm:$0xff] %v237
  %254 = vst [vmem:[#allocation2 + $0x58] sm:$0xff] %v238
  %255 = vst [vmem:[#allocation2 + $0x60] sm:$0xff] %v239
  %256 = vst [vmem:[#allocation2 + $0x68] sm:$0xff] %v240
  %257 = vst [vmem:[#allocation2 + $0x70] sm:$0xff] %v241
  %258 = vst [vmem:[#allocation2 + $0x78] sm:$0xff] %v242
  // Predicated region
  $region14: #{vision_discriminator_forward.7} parent=0 // pred_check
    %p259 = pneg %p14
  $region15: #{vision_discriminator_forward.7} parent=0 // pred_check_branch
    %261 = sbr.rel (%p259) target = $region17
  $region16: #{vision_discriminator_forward.7} parent=0 // pred_region
    %v262 = vld [vmem:[#allocation2] sm:$0xff]
    %v263 = vld [vmem:[#allocation2 + $0x8] sm:$0xff]
    %v264 = vld [vmem:[#allocation2 + $0x10] sm:$0xff]
    %v265 = vld [vmem:[#allocation2 + $0x18] sm:$0xff]
    %v266 = vld [vmem:[#allocation2 + $0x20] sm:$0xff]
    %v267 = vld [vmem:[#allocation2 + $0x28] sm:$0xff]
    %v268 = vld [vmem:[#allocation2 + $0x30] sm:$0xff]
    %v269 = vld [vmem:[#allocation2 + $0x38] sm:$0xff]
    %v270 = vld [vmem:[#allocation2 + $0x40] sm:$0xff]
    %v271 = vld [vmem:[#allocation2 + $0x48] sm:$0xff]
    %v272 = vld [vmem:[#allocation2 + $0x50] sm:$0xff]
    %v273 = vld [vmem:[#allocation2 + $0x58] sm:$0xff]
    %v274 = vld [vmem:[#allocation2 + $0x60] sm:$0xff]
    %v275 = vld [vmem:[#allocation2 + $0x68] sm:$0xff]
    %v276 = vld [vmem:[#allocation2 + $0x70] sm:$0xff]
    %v277 = vld [vmem:[#allocation2 + $0x78] sm:$0xff]
    %278 = vst [vmem:[%s2] sm:$0xff] %v262
    %279 = vst [vmem:[%s2 + $0x8] sm:$0xff] %v263
    %280 = vst [vmem:[%s2 + $0x10] sm:$0xff] %v264
    %281 = vst [vmem:[%s2 + $0x18] sm:$0xff] %v265
    %282 = vst [vmem:[%s2 + $0x20] sm:$0xff] %v266
    %283 = vst [vmem:[%s2 + $0x28] sm:$0xff] %v267
    %284 = vst [vmem:[%s2 + $0x30] sm:$0xff] %v268
    %285 = vst [vmem:[%s2 + $0x38] sm:$0xff] %v269
    %286 = vst [vmem:[%s2 + $0x40] sm:$0xff] %v270
    %287 = vst [vmem:[%s2 + $0x48] sm:$0xff] %v271
    %288 = vst [vmem:[%s2 + $0x50] sm:$0xff] %v272
    %289 = vst [vmem:[%s2 + $0x58] sm:$0xff] %v273
    %290 = vst [vmem:[%s2 + $0x60] sm:$0xff] %v274
    %291 = vst [vmem:[%s2 + $0x68] sm:$0xff] %v275
    %292 = vst [vmem:[%s2 + $0x70] sm:$0xff] %v276
    %293 = vst [vmem:[%s2 + $0x78] sm:$0xff] %v277
    %v294 = vadd.f32 %v262, %v263
    %v295 = vadd.f32 %v294, %v264
    %v296 = vadd.f32 %v295, %v265
    %v297 = vadd.f32 %v296, %v266
    %v298 = vadd.f32 %v297, %v267
    %v299 = vadd.f32 %v298, %v268
    %v300 = vadd.f32 %v299, %v269
    %v301 = vadd.f32 %v300, %v270
    %v302 = vadd.f32 %v301, %v271
    %v303 = vadd.f32 %v302, %v272
    %v304 = vadd.f32 %v303, %v273
    %v305 = vadd.f32 %v304, %v274
    %v306 = vadd.f32 %v305, %v275
    %v307 = vadd.f32 %v306, %v276
    %v308 = vadd.f32 %v307, %v277
    %v309 = vrot.slane %v308, 4
    %v310 = vadd.f32 %v308, %v309
    %v311 = vrot.slane %v310, 2
    %v312 = vadd.f32 %v310, %v311
    %v313 = vrot.slane %v312, 1
    %v314 = vadd.f32 %v312, %v313
    %315 = vst [vmem:[%s3] sm:$0x1] %v314
    %v316 = vmul.f32 %v262, %v262
    %v317 = vmul.f32 %v263, %v263
    %v318 = vmul.f32 %v264, %v264
    %v319 = vmul.f32 %v265, %v265
    %v320 = vmul.f32 %v266, %v266
    %v321 = vmul.f32 %v267, %v267
    %v322 = vmul.f32 %v268, %v268
    %v323 = vmul.f32 %v269, %v269
    %v324 = vmul.f32 %v270, %v270
    %v325 = vmul.f32 %v271, %v271
    %v326 = vmul.f32 %v272, %v272
    %v327 = vmul.f32 %v273, %v273
    %v328 = vmul.f32 %v274, %v274
    %v329 = vmul.f32 %v275, %v275
    %v330 = vmul.f32 %v276, %v276
    %v331 = vmul.f32 %v277, %v277
    %v332 = vadd.f32 %v316, %v317
    %v333 = vadd.f32 %v332, %v318
    %v334 = vadd.f32 %v333, %v319
    %v335 = vadd.f32 %v334, %v320
    %v336 = vadd.f32 %v335, %v321
    %v337 = vadd.f32 %v336, %v322
    %v338 = vadd.f32 %v337, %v323
    %v339 = vadd.f32 %v338, %v324
    %v340 = vadd.f32 %v339, %v325
    %v341 = vadd.f32 %v340, %v326
    %v342 = vadd.f32 %v341, %v327
    %v343 = vadd.f32 %v342, %v328
    %v344 = vadd.f32 %v343, %v329
    %v345 = vadd.f32 %v344, %v330
    %v346 = vadd.f32 %v345, %v331
    %v347 = vrot.slane %v346, 4
    %v348 = vadd.f32 %v346, %v347
    %v349 = vrot.slane %v348, 2
    %v350 = vadd.f32 %v348, %v349
    %v351 = vrot.slane %v350, 1
    %v352 = vadd.f32 %v350, %v351
    %353 = vst [vmem:[%s4] sm:$0x1] %v352
  $region17: #{vision_discriminator_forward.7} parent=0 // pred_fallthru
    _
  // Predicated region
  $region18: #{vision_discriminator_forward.7} parent=0 // pred_check
    _
  $region19: #{vision_discriminator_forward.7} parent=0 // pred_check_branch
    %355 = sbr.rel (0) target = $region21
  $region20: #{vision_discriminator_forward.7} parent=0 // pred_region
    _
  $region21: #{vision_discriminator_forward.7} parent=0 // pred_fallthru
    _
  // Predicated region
  $region22: #{vision_discriminator_forward.7} parent=0 // pred_check
    _
  $region23: #{vision_discriminator_forward.7} parent=0 // pred_check_branch
    %357 = sbr.rel (0) target = $region25
  $region24: #{vision_discriminator_forward.7} parent=0 // pred_region
    _
  $region25: #{vision_discriminator_forward.7} parent=0 // pred_fallthru
    _
  // Predicated region
  $region26: #{vision_discriminator_forward.7} parent=0 // pred_check
    _
  $region27: #{vision_discriminator_forward.7} parent=0 // pred_check_branch
    %359 = sbr.rel (0) target = $region29
  $region28: #{vision_discriminator_forward.7} parent=0 // pred_region
    _
  $region29: #{vision_discriminator_forward.7} parent=0 // pred_fallthru
    _
  // Predicated region
  $region30: #{vision_discriminator_forward.7} parent=0 // pred_check
    _
  $region31: #{vision_discriminator_forward.7} parent=0 // pred_check_branch
    %361 = sbr.rel (0) target = $region33
  $region32: #{vision_discriminator_forward.7} parent=0 // pred_region
    _
  $region33: #{vision_discriminator_forward.7} parent=0 // pred_fallthru
    _
  // Predicated region
  $region34: #{vision_discriminator_forward.7} parent=0 // pred_check
    _
  $region35: #{vision_discriminator_forward.7} parent=0 // pred_check_branch
    %363 = sbr.rel (0) target = $region37
  $region36: #{vision_discriminator_forward.7} parent=0 // pred_region
    _
  $region37: #{vision_discriminator_forward.7} parent=0 // pred_fallthru
    _
  // Predicated region
  $region38: #{vision_discriminator_forward.7} parent=0 // pred_check
    _
  $region39: #{vision_discriminator_forward.7} parent=0 // pred_check_branch
    %365 = sbr.rel (0) target = $region41
  $region40: #{vision_discriminator_forward.7} parent=0 // pred_region
    _
  $region41: #{vision_discriminator_forward.7} parent=0 // pred_fallthru
    _

// kernel: vision_discriminator_forward.9
$region0: #{vision_discriminator_forward.9}
  #allocation0 [shape = 'u32[]', space=smem, size = 0x4, offset = 0x4, fixed_abs, tag = 'smem constant byte address 0x4 - core index']
  #allocation1 [shape = 'u32[72,128]{1,0:T(1,128)}', space=vmem, size = 0x9000, scoped, tag = 'internal scratch']
  #allocation2 [shape = 'f32[32,128]{1,0:T(8,128)}', space=vmem, size = 0x4000, scoped, tag = 'scratch operand']
  %s0 = inlined_call_operand.vmem [shape: bf16[32,128], index: 0, kind: input, shape index: {}]
  %s1 = inlined_call_operand.vmem [shape: bf16[128,128], index: 1, kind: input, shape index: {}]
  %s2 = inlined_call_operand.vmem [shape: f32[32,128], index: 2, kind: output, shape index: {0}]
  %s3 = inlined_call_operand.vmem [shape: f32[1,1,128], index: 3, kind: output, shape index: {1}]
  %s4 = inlined_call_operand.vmem [shape: f32[1,1,128], index: 4, kind: output, shape index: {2}]
  %5 = xla_tuple %s2, %s3, %s4
  %s6 = sld [smem:[#allocation0]]
  $region42: #{vision_discriminator_forward.9} parent=0
    _
  %s8 = ssub.s32 1, %s6
  %s9 = scalar_select 0, %s8, %s6
  // Predicated region
  $region2: #{vision_discriminator_forward.9} parent=0 // pred_check
    _
  $region3: #{vision_discriminator_forward.9} parent=0 // pred_check_branch
    %11 = sbr.rel (0) target = $region5
  $region4: #{vision_discriminator_forward.9} parent=0 // pred_region
    _
  $region5: #{vision_discriminator_forward.9} parent=0 // pred_fallthru
    _
  // Predicated region
  $region6: #{vision_discriminator_forward.9} parent=0 // pred_check
    _
  $region7: #{vision_discriminator_forward.9} parent=0 // pred_check_branch
    %13 = sbr.rel (0) target = $region9
  $region8: #{vision_discriminator_forward.9} parent=0 // pred_region
    _
  $region9: #{vision_discriminator_forward.9} parent=0 // pred_fallthru
    _
  %p14 = scmp.eq.s32.totalorder 0, 0
  // Predicated region
  $region10: #{vision_discriminator_forward.9} parent=0 // pred_check
    %p15 = pneg %p14
  $region11: #{vision_discriminator_forward.9} parent=0 // pred_check_branch
    %17 = sbr.rel (%p15) target = $region13
  $region12: #{vision_discriminator_forward.9} parent=0 // pred_region
    %18 = vst [vmem:[#allocation2] sm:$0xff] 0.0
    %19 = vst [vmem:[#allocation2 + $0x8] sm:$0xff] 0.0
    %20 = vst [vmem:[#allocation2 + $0x10] sm:$0xff] 0.0
    %21 = vst [vmem:[#allocation2 + $0x18] sm:$0xff] 0.0
  $region13: #{vision_discriminator_forward.9} parent=0 // pred_fallthru
    _
  %v22 = vld [vmem:[#allocation2] sm:$0xff]
  %v23 = vld [vmem:[#allocation2 + $0x8] sm:$0xff]
  %v24 = vld [vmem:[#allocation2 + $0x10] sm:$0xff]
  %v25 = vld [vmem:[#allocation2 + $0x18] sm:$0xff]
  %v26 = vld [vmem:[%s0] sm:$0xf]
  %v27 = vld [vmem:[%s0 + $0x4] sm:$0xf]
  %v28 = vld [vmem:[%s0 + $0x8] sm:$0xf]
  %v29 = vld [vmem:[%s0 + $0xc] sm:$0xf]
  %v30 = vld [vmem:[%s1] sm:$0xf]
  %v31 = vld [vmem:[%s1 + $0x4] sm:$0xf]
  %v32 = vld [vmem:[%s1 + $0x8] sm:$0xf]
  %v33 = vld [vmem:[%s1 + $0xc] sm:$0xf]
  %v34 = vld [vmem:[%s1 + $0x10] sm:$0xf]
  %v35 = vld [vmem:[%s1 + $0x14] sm:$0xf]
  %v36 = vld [vmem:[%s1 + $0x18] sm:$0xf]
  %v37 = vld [vmem:[%s1 + $0x1c] sm:$0xf]
  %v38 = vld [vmem:[%s1 + $0x20] sm:$0xf]
  %v39 = vld [vmem:[%s1 + $0x24] sm:$0xf]
  %v40 = vld [vmem:[%s1 + $0x28] sm:$0xf]
  %v41 = vld [vmem:[%s1 + $0x2c] sm:$0xf]
  %v42 = vld [vmem:[%s1 + $0x30] sm:$0xf]
  %v43 = vld [vmem:[%s1 + $0x34] sm:$0xf]
  %v44 = vld [vmem:[%s1 + $0x38] sm:$0xf]
  %v45 = vld [vmem:[%s1 + $0x3c] sm:$0xf]
  %v50 = vunpack.c.l.b16 %v26
  %v51 = vunpack.c.l.b16 %v27
  %v52 = vunpack.c.l.b16 %v28
  %v53 = vunpack.c.l.b16 %v29
  %v54 = vpack.c.b16 %v51, %v50
  %v55 = vpack.c.b16 %v53, %v52
  %v74 = vunpack.c.l.b16 %v30
  %v75 = vunpack.c.l.b16 %v31
  %v76 = vunpack.c.l.b16 %v32
  %v77 = vunpack.c.l.b16 %v33
  %v78 = vunpack.c.l.b16 %v34
  %v79 = vunpack.c.l.b16 %v35
  %v80 = vunpack.c.l.b16 %v36
  %v81 = vunpack.c.l.b16 %v37
  %v82 = vunpack.c.l.b16 %v38
  %v83 = vunpack.c.l.b16 %v39
  %v84 = vunpack.c.l.b16 %v40
  %v85 = vunpack.c.l.b16 %v41
  %v86 = vunpack.c.l.b16 %v42
  %v87 = vunpack.c.l.b16 %v43
  %v88 = vunpack.c.l.b16 %v44
  %v89 = vunpack.c.l.b16 %v45
  %v90 = vpack.c.b16 %v75, %v74
  %v91 = vpack.c.b16 %v77, %v76
  %v92 = vpack.c.b16 %v79, %v78
  %v93 = vpack.c.b16 %v81, %v80
  %v94 = vpack.c.b16 %v83, %v82
  %v95 = vpack.c.b16 %v85, %v84
  %v96 = vpack.c.b16 %v87, %v86
  %v97 = vpack.c.b16 %v89, %v88
  %106 = vmatpush.bf16.msra.mxu0 %v97
  %107 = vmatpush.bf16.msra.mxu0 %v96
  %108 = vmatpush.bf16.msra.mxu0 %v95
  %109 = vmatpush.bf16.msra.mxu0 %v94
  %110 = vmatpush.bf16.msra.mxu0 %v93
  %111 = vmatpush.bf16.msra.mxu0 %v92
  %112 = vmatpush.bf16.msra.mxu0 %v91
  %113 = vmatpush.bf16.msra.mxu0 %v90
  %114 = vmatmul.bf16.gmra.mxu0 %v54
  %v115 = vpop.f32.mrf.mxu0
  %v116 = vadd.f32 0.0, %v115
  %v117 = vpop.f32.mrf.mxu0
  %v118 = vadd.f32 0.0, %v117
  %119 = vmatmul.bf16.gmra.mxu0 %v55
  %v120 = vpop.f32.mrf.mxu0
  %v121 = vadd.f32 0.0, %v120
  %v122 = vpop.f32.mrf.mxu0
  %v123 = vadd.f32 0.0, %v122
  %124 = vdwg.mxu0
  %v125 = vadd.f32 %v22, %v116
  %v126 = vadd.f32 %v23, %v118
  %v127 = vadd.f32 %v24, %v121
  %v128 = vadd.f32 %v25, %v123
  %129 = vst [vmem:[#allocation2] sm:$0xff] %v125
  %130 = vst [vmem:[#allocation2 + $0x8] sm:$0xff] %v126
  %131 = vst [vmem:[#allocation2 + $0x10] sm:$0xff] %v127
  %132 = vst [vmem:[#allocation2 + $0x18] sm:$0xff] %v128
  // Predicated region
  $region14: #{vision_discriminator_forward.9} parent=0 // pred_check
    %p133 = pneg %p14
  $region15: #{vision_discriminator_forward.9} parent=0 // pred_check_branch
    %135 = sbr.rel (%p133) target = $region17
  $region16: #{vision_discriminator_forward.9} parent=0 // pred_region
    %v136 = vld [vmem:[#allocation2] sm:$0xff]
    %v137 = vld [vmem:[#allocation2 + $0x8] sm:$0xff]
    %v138 = vld [vmem:[#allocation2 + $0x10] sm:$0xff]
    %v139 = vld [vmem:[#allocation2 + $0x18] sm:$0xff]
    %140 = vst [vmem:[%s2] sm:$0xff] %v136
    %141 = vst [vmem:[%s2 + $0x8] sm:$0xff] %v137
    %142 = vst [vmem:[%s2 + $0x10] sm:$0xff] %v138
    %143 = vst [vmem:[%s2 + $0x18] sm:$0xff] %v139
    %v144 = vadd.f32 %v136, %v137
    %v145 = vadd.f32 %v144, %v138
    %v146 = vadd.f32 %v145, %v139
    %v147 = vrot.slane %v146, 4
    %v148 = vadd.f32 %v146, %v147
    %v149 = vrot.slane %v148, 2
    %v150 = vadd.f32 %v148, %v149
    %v151 = vrot.slane %v150, 1
    %v152 = vadd.f32 %v150, %v151
    %153 = vst [vmem:[%s3] sm:$0x1] %v152
    %v154 = vmul.f32 %v136, %v136
    %v155 = vmul.f32 %v137, %v137
    %v156 = vmul.f32 %v138, %v138
    %v157 = vmul.f32 %v139, %v139
    %v158 = vadd.f32 %v154, %v155
    %v159 = vadd.f32 %v158, %v156
    %v160 = vadd.f32 %v159, %v157
    %v161 = vrot.slane %v160, 4
    %v162 = vadd.f32 %v160, %v161
    %v163 = vrot.slane %v162, 2
    %v164 = vadd.f32 %v162, %v163
    %v165 = vrot.slane %v164, 1
    %v166 = vadd.f32 %v164, %v165
    %167 = vst [vmem:[%s4] sm:$0x1] %v166
  $region17: #{vision_discriminator_forward.9} parent=0 // pred_fallthru
    _
  // Predicated region
  $region18: #{vision_discriminator_forward.9} parent=0 // pred_check
    _
  $region19: #{vision_discriminator_forward.9} parent=0 // pred_check_branch
    %169 = sbr.rel (0) target = $region21
  $region20: #{vision_discriminator_forward.9} parent=0 // pred_region
    _
  $region21: #{vision_discriminator_forward.9} parent=0 // pred_fallthru
    _
  // Predicated region
  $region22: #{vision_discriminator_forward.9} parent=0 // pred_check
    _
  $region23: #{vision_discriminator_forward.9} parent=0 // pred_check_branch
    %171 = sbr.rel (0) target = $region25
  $region24: #{vision_discriminator_forward.9} parent=0 // pred_region
    _
  $region25: #{vision_discriminator_forward.9} parent=0 // pred_fallthru
    _
  // Predicated region
  $region26: #{vision_discriminator_forward.9} parent=0 // pred_check
    _
  $region27: #{vision_discriminator_forward.9} parent=0 // pred_check_branch
    %173 = sbr.rel (0) target = $region29
  $region28: #{vision_discriminator_forward.9} parent=0 // pred_region
    _
  $region29: #{vision_discriminator_forward.9} parent=0 // pred_fallthru
    _
  // Predicated region
  $region30: #{vision_discriminator_forward.9} parent=0 // pred_check
    _
  $region31: #{vision_discriminator_forward.9} parent=0 // pred_check_branch
    %175 = sbr.rel (0) target = $region33
  $region32: #{vision_discriminator_forward.9} parent=0 // pred_region
    _
  $region33: #{vision_discriminator_forward.9} parent=0 // pred_fallthru
    _
  // Predicated region
  $region34: #{vision_discriminator_forward.9} parent=0 // pred_check
    _
  $region35: #{vision_discriminator_forward.9} parent=0 // pred_check_branch
    %177 = sbr.rel (0) target = $region37
  $region36: #{vision_discriminator_forward.9} parent=0 // pred_region
    _
  $region37: #{vision_discriminator_forward.9} parent=0 // pred_fallthru
    _
  // Predicated region
  $region38: #{vision_discriminator_forward.9} parent=0 // pred_check
    _
  $region39: #{vision_discriminator_forward.9} parent=0 // pred_check_branch
    %179 = sbr.rel (0) target = $region41
  $region40: #{vision_discriminator_forward.9} parent=0 // pred_region
    _
  $region41: #{vision_discriminator_forward.9} parent=0 // pred_fallthru
    _

// kernel: vision_discriminator_forward.10
$region0: #{vision_discriminator_forward.10}
  #allocation0 [shape = 'u32[]', space=smem, size = 0x4, offset = 0x4, fixed_abs, tag = 'smem constant byte address 0x4 - core index']
  #allocation1 [shape = 'u32[72,128]{1,0:T(1,128)}', space=vmem, size = 0x9000, scoped, tag = 'internal scratch']
  %s0 = inlined_call_operand.vmem [shape: f32[32,128], index: 0, kind: input, shape index: {}]
  %s1 = inlined_call_operand.vmem [shape: f32[1,128], index: 1, kind: input, shape index: {}]
  %s2 = inlined_call_operand.vmem [shape: f32[1,128], index: 2, kind: input, shape index: {}]
  %s3 = inlined_call_operand.vmem [shape: bf16[32,128], index: 3, kind: output, shape index: {}]
  %s4 = sld [smem:[#allocation0]]
  $region22: #{vision_discriminator_forward.10} parent=0
    _
  %s6 = ssub.s32 1, %s4
  %s7 = scalar_select 0, %s6, %s4
  // Predicated region
  $region2: #{vision_discriminator_forward.10} parent=0 // pred_check
    _
  $region3: #{vision_discriminator_forward.10} parent=0 // pred_check_branch
    %9 = sbr.rel (0) target = $region5
  $region4: #{vision_discriminator_forward.10} parent=0 // pred_region
    _
  $region5: #{vision_discriminator_forward.10} parent=0 // pred_fallthru
    _
  // Predicated region
  $region6: #{vision_discriminator_forward.10} parent=0 // pred_check
    _
  $region7: #{vision_discriminator_forward.10} parent=0 // pred_check_branch
    %11 = sbr.rel (0) target = $region9
  $region8: #{vision_discriminator_forward.10} parent=0 // pred_region
    _
  $region9: #{vision_discriminator_forward.10} parent=0 // pred_fallthru
    _
  // Predicated region
  $region10: #{vision_discriminator_forward.10} parent=0 // pred_check
    _
  $region11: #{vision_discriminator_forward.10} parent=0 // pred_check_branch
    %13 = sbr.rel (0) target = $region13
  $region12: #{vision_discriminator_forward.10} parent=0 // pred_region
    _
  $region13: #{vision_discriminator_forward.10} parent=0 // pred_fallthru
    _
  %v14 = vld [vmem:[%s0] sm:$0xff]
  %v15 = vld [vmem:[%s0 + $0x8] sm:$0xff]
  %v16 = vld [vmem:[%s0 + $0x10] sm:$0xff]
  %v17 = vld [vmem:[%s0 + $0x18] sm:$0xff]
  %v18 = vld [vmem:[%s1] sm:$0x1]
  %v20 = vperm.slane %v18, 0
  %v22 = vmul.f32 %v14, %v20
  %v23 = vmul.f32 %v15, %v20
  %v24 = vmul.f32 %v16, %v20
  %v25 = vmul.f32 %v17, %v20
  %v26 = vld [vmem:[%s2] sm:$0x1]
  %v28 = vperm.slane %v26, 0
  %v30 = vadd.f32 %v22, %v28
  %v31 = vadd.f32 %v23, %v28
  %v32 = vadd.f32 %v24, %v28
  %v33 = vadd.f32 %v25, %v28
  %vm34 = vcmp.ge.f32.partialorder %v30, 0.0
  %vm35 = vcmp.ge.f32.partialorder %v31, 0.0
  %vm36 = vcmp.ge.f32.partialorder %v32, 0.0
  %vm37 = vcmp.ge.f32.partialorder %v33, 0.0
  %v38 = vmul.f32 %v30, 0.2
  %v39 = vmul.f32 %v31, 0.2
  %v40 = vmul.f32 %v32, 0.2
  %v41 = vmul.f32 %v33, 0.2
  %v42 = vsel %vm34, %v30, %v38
  %v43 = vsel %vm35, %v31, %v39
  %v44 = vsel %vm36, %v32, %v40
  %v45 = vsel %vm37, %v33, %v41
  %v46 = vpack.c.bf16 %v42, %v42
  %v47 = vpack.c.bf16 %v43, %v43
  %v48 = vpack.c.bf16 %v44, %v44
  %v49 = vpack.c.bf16 %v45, %v45
  %50 = vst [vmem:[%s3] sm:$0xf] %v46
  %51 = vst [vmem:[%s3 + $0x4] sm:$0xf] %v47
  %52 = vst [vmem:[%s3 + $0x8] sm:$0xf] %v48
  %53 = vst [vmem:[%s3 + $0xc] sm:$0xf] %v49
  // Predicated region
  $region14: #{vision_discriminator_forward.10} parent=0 // pred_check
    _
  $region15: #{vision_discriminator_forward.10} parent=0 // pred_check_branch
    %55 = sbr.rel (0) target = $region17
  $region16: #{vision_discriminator_forward.10} parent=0 // pred_region
    _
  $region17: #{vision_discriminator_forward.10} parent=0 // pred_fallthru
    _
  // Predicated region
  $region18: #{vision_discriminator_forward.10} parent=0 // pred_check
    _
  $region19: #{vision_discriminator_forward.10} parent=0 // pred_check_branch
    %57 = sbr.rel (0) target = $region21
  $region20: #{vision_discriminator_forward.10} parent=0 // pred_region
    _
  $region21: #{vision_discriminator_forward.10} parent=0 // pred_fallthru
    _

// kernel: vision_discriminator_forward.11
$region0: #{vision_discriminator_forward.11}
  #allocation0 [shape = 'u32[]', space=smem, size = 0x4, offset = 0x4, fixed_abs, tag = 'smem constant byte address 0x4 - core index']
  #allocation1 [shape = 'u32[72,128]{1,0:T(1,128)}', space=vmem, size = 0x9000, scoped, tag = 'internal scratch']
  #allocation2 [shape = 'f32[32,128]{1,0:T(8,128)}', space=vmem, size = 0x4000, scoped, tag = 'scratch operand']
  %s0 = inlined_call_operand.vmem [shape: bf16[32,256], index: 0, kind: input, shape index: {}]
  %s1 = inlined_call_operand.vmem [shape: bf16[256,128], index: 1, kind: input, shape index: {}]
  %s2 = inlined_call_operand.vmem [shape: f32[32,128], index: 2, kind: output, shape index: {0}]
  %s3 = inlined_call_operand.vmem [shape: f32[1,1,128], index: 3, kind: output, shape index: {1}]
  %s4 = inlined_call_operand.vmem [shape: f32[1,1,128], index: 4, kind: output, shape index: {2}]
  %5 = xla_tuple %s2, %s3, %s4
  %s6 = sld [smem:[#allocation0]]
  $region42: #{vision_discriminator_forward.11} parent=0
    _
  %s8 = ssub.s32 1, %s6
  %s9 = scalar_select 0, %s8, %s6
  // Predicated region
  $region2: #{vision_discriminator_forward.11} parent=0 // pred_check
    _
  $region3: #{vision_discriminator_forward.11} parent=0 // pred_check_branch
    %11 = sbr.rel (0) target = $region5
  $region4: #{vision_discriminator_forward.11} parent=0 // pred_region
    _
  $region5: #{vision_discriminator_forward.11} parent=0 // pred_fallthru
    _
  // Predicated region
  $region6: #{vision_discriminator_forward.11} parent=0 // pred_check
    _
  $region7: #{vision_discriminator_forward.11} parent=0 // pred_check_branch
    %13 = sbr.rel (0) target = $region9
  $region8: #{vision_discriminator_forward.11} parent=0 // pred_region
    _
  $region9: #{vision_discriminator_forward.11} parent=0 // pred_fallthru
    _
  %p14 = scmp.eq.s32.totalorder 0, 0
  // Predicated region
  $region10: #{vision_discriminator_forward.11} parent=0 // pred_check
    %p15 = pneg %p14
  $region11: #{vision_discriminator_forward.11} parent=0 // pred_check_branch
    %17 = sbr.rel (%p15) target = $region13
  $region12: #{vision_discriminator_forward.11} parent=0 // pred_region
    %18 = vst [vmem:[#allocation2] sm:$0xff] 0.0
    %19 = vst [vmem:[#allocation2 + $0x8] sm:$0xff] 0.0
    %20 = vst [vmem:[#allocation2 + $0x10] sm:$0xff] 0.0
    %21 = vst [vmem:[#allocation2 + $0x18] sm:$0xff] 0.0
  $region13: #{vision_discriminator_forward.11} parent=0 // pred_fallthru
    _
  %v22 = vld [vmem:[#allocation2] sm:$0xff]
  %v23 = vld [vmem:[#allocation2 + $0x8] sm:$0xff]
  %v24 = vld [vmem:[#allocation2 + $0x10] sm:$0xff]
  %v25 = vld [vmem:[#allocation2 + $0x18] sm:$0xff]
  %v26 = vld [vmem:[%s0] sm:$0xff]
  %v27 = vld [vmem:[%s0 + $0x8] sm:$0xff]
  %v28 = vld [vmem:[%s0 + $0x10] sm:$0xff]
  %v29 = vld [vmem:[%s0 + $0x18] sm:$0xff]
  %v30 = vld [vmem:[%s1] sm:$0xf]
  %v31 = vld [vmem:[%s1 + $0x4] sm:$0xf]
  %v32 = vld [vmem:[%s1 + $0x8] sm:$0xf]
  %v33 = vld [vmem:[%s1 + $0xc] sm:$0xf]
  %v34 = vld [vmem:[%s1 + $0x10] sm:$0xf]
  %v35 = vld [vmem:[%s1 + $0x14] sm:$0xf]
  %v36 = vld [vmem:[%s1 + $0x18] sm:$0xf]
  %v37 = vld [vmem:[%s1 + $0x1c] sm:$0xf]
  %v38 = vld [vmem:[%s1 + $0x20] sm:$0xf]
  %v39 = vld [vmem:[%s1 + $0x24] sm:$0xf]
  %v40 = vld [vmem:[%s1 + $0x28] sm:$0xf]
  %v41 = vld [vmem:[%s1 + $0x2c] sm:$0xf]
  %v42 = vld [vmem:[%s1 + $0x30] sm:$0xf]
  %v43 = vld [vmem:[%s1 + $0x34] sm:$0xf]
  %v44 = vld [vmem:[%s1 + $0x38] sm:$0xf]
  %v45 = vld [vmem:[%s1 + $0x3c] sm:$0xf]
  %v46 = vld [vmem:[%s1 + $0x40] sm:$0xf]
  %v47 = vld [vmem:[%s1 + $0x44] sm:$0xf]
  %v48 = vld [vmem:[%s1 + $0x48] sm:$0xf]
  %v49 = vld [vmem:[%s1 + $0x4c] sm:$0xf]
  %v50 = vld [vmem:[%s1 + $0x50] sm:$0xf]
  %v51 = vld [vmem:[%s1 + $0x54] sm:$0xf]
  %v52 = vld [vmem:[%s1 + $0x58] sm:$0xf]
  %v53 = vld [vmem:[%s1 + $0x5c] sm:$0xf]
  %v54 = vld [vmem:[%s1 + $0x60] sm:$0xf]
  %v55 = vld [vmem:[%s1 + $0x64] sm:$0xf]
  %v56 = vld [vmem:[%s1 + $0x68] sm:$0xf]
  %v57 = vld [vmem:[%s1 + $0x6c] sm:$0xf]
  %v58 = vld [vmem:[%s1 + $0x70] sm:$0xf]
  %v59 = vld [vmem:[%s1 + $0x74] sm:$0xf]
  %v60 = vld [vmem:[%s1 + $0x78] sm:$0xf]
  %v61 = vld [vmem:[%s1 + $0x7c] sm:$0xf]
  %v66 = vunpack.c.l.b16 %v26
  %v67 = vunpack.c.h.b16 %v26
  %v68 = vunpack.c.l.b16 %v27
  %v69 = vunpack.c.h.b16 %v27
  %v70 = vunpack.c.l.b16 %v28
  %v71 = vunpack.c.h.b16 %v28
  %v72 = vunpack.c.l.b16 %v29
  %v73 = vunpack.c.h.b16 %v29
  %v74 = vpack.c.b16 %v68, %v66
  %v75 = vpack.c.b16 %v69, %v67
  %v76 = vpack.c.b16 %v72, %v70
  %v77 = vpack.c.b16 %v73, %v71
  %v114 = vunpack.c.l.b16 %v30
  %v115 = vunpack.c.l.b16 %v31
  %v116 = vunpack.c.l.b16 %v32
  %v117 = vunpack.c.l.b16 %v33
  %v118 = vunpack.c.l.b16 %v34
  %v119 = vunpack.c.l.b16 %v35
  %v120 = vunpack.c.l.b16 %v36
  %v121 = vunpack.c.l.b16 %v37
  %v122 = vunpack.c.l.b16 %v38
  %v123 = vunpack.c.l.b16 %v39
  %v124 = vunpack.c.l.b16 %v40
  %v125 = vunpack.c.l.b16 %v41
  %v126 = vunpack.c.l.b16 %v42
  %v127 = vunpack.c.l.b16 %v43
  %v128 = vunpack.c.l.b16 %v44
  %v129 = vunpack.c.l.b16 %v45
  %v130 = vunpack.c.l.b16 %v46
  %v131 = vunpack.c.l.b16 %v47
  %v132 = vunpack.c.l.b16 %v48
  %v133 = vunpack.c.l.b16 %v49
  %v134 = vunpack.c.l.b16 %v50
  %v135 = vunpack.c.l.b16 %v51
  %v136 = vunpack.c.l.b16 %v52
  %v137 = vunpack.c.l.b16 %v53
  %v138 = vunpack.c.l.b16 %v54
  %v139 = vunpack.c.l.b16 %v55
  %v140 = vunpack.c.l.b16 %v56
  %v141 = vunpack.c.l.b16 %v57
  %v142 = vunpack.c.l.b16 %v58
  %v143 = vunpack.c.l.b16 %v59
  %v144 = vunpack.c.l.b16 %v60
  %v145 = vunpack.c.l.b16 %v61
  %v146 = vpack.c.b16 %v115, %v114
  %v147 = vpack.c.b16 %v117, %v116
  %v148 = vpack.c.b16 %v119, %v118
  %v149 = vpack.c.b16 %v121, %v120
  %v150 = vpack.c.b16 %v123, %v122
  %v151 = vpack.c.b16 %v125, %v124
  %v152 = vpack.c.b16 %v127, %v126
  %v153 = vpack.c.b16 %v129, %v128
  %v154 = vpack.c.b16 %v131, %v130
  %v155 = vpack.c.b16 %v133, %v132
  %v156 = vpack.c.b16 %v135, %v134
  %v157 = vpack.c.b16 %v137, %v136
  %v158 = vpack.c.b16 %v139, %v138
  %v159 = vpack.c.b16 %v141, %v140
  %v160 = vpack.c.b16 %v143, %v142
  %v161 = vpack.c.b16 %v145, %v144
  %178 = vmatpush.bf16.msra.mxu0 %v153
  %179 = vmatpush.bf16.msra.mxu0 %v152
  %180 = vmatpush.bf16.msra.mxu0 %v151
  %181 = vmatpush.bf16.msra.mxu0 %v150
  %182 = vmatpush.bf16.msra.mxu0 %v149
  %183 = vmatpush.bf16.msra.mxu0 %v148
  %184 = vmatpush.bf16.msra.mxu0 %v147
  %185 = vmatpush.bf16.msra.mxu0 %v146
  %186 = vmatmul.bf16.gmra.mxu0 %v74
  %v187 = vpop.f32.mrf.mxu0
  %v188 = vadd.f32 0.0, %v187
  %v189 = vpop.f32.mrf.mxu0
  %v190 = vadd.f32 0.0, %v189
  %191 = vmatmul.bf16.gmra.mxu0 %v76
  %v192 = vpop.f32.mrf.mxu0
  %v193 = vadd.f32 0.0, %v192
  %v194 = vpop.f32.mrf.mxu0
  %v195 = vadd.f32 0.0, %v194
  %196 = vdwg.mxu0
  %197 = vmatpush.bf16.msra.mxu0 %v161
  %198 = vmatpush.bf16.msra.mxu0 %v160
  %199 = vmatpush.bf16.msra.mxu0 %v159
  %200 = vmatpush.bf16.msra.mxu0 %v158
  %201 = vmatpush.bf16.msra.mxu0 %v157
  %202 = vmatpush.bf16.msra.mxu0 %v156
  %203 = vmatpush.bf16.msra.mxu0 %v155
  %204 = vmatpush.bf16.msra.mxu0 %v154
  %205 = vmatmul.bf16.gmra.mxu0 %v75
  %v206 = vpop.f32.mrf.mxu0
  %v207 = vadd.f32 %v188, %v206
  %v208 = vpop.f32.mrf.mxu0
  %v209 = vadd.f32 %v190, %v208
  %210 = vmatmul.bf16.gmra.mxu0 %v77
  %v211 = vpop.f32.mrf.mxu0
  %v212 = vadd.f32 %v193, %v211
  %v213 = vpop.f32.mrf.mxu0
  %v214 = vadd.f32 %v195, %v213
  %215 = vdwg.mxu0
  %v216 = vadd.f32 %v22, %v207
  %v217 = vadd.f32 %v23, %v209
  %v218 = vadd.f32 %v24, %v212
  %v219 = vadd.f32 %v25, %v214
  %220 = vst [vmem:[#allocation2] sm:$0xff] %v216
  %221 = vst [vmem:[#allocation2 + $0x8] sm:$0xff] %v217
  %222 = vst [vmem:[#allocation2 + $0x10] sm:$0xff] %v218
  %223 = vst [vmem:[#allocation2 + $0x18] sm:$0xff] %v219
  // Predicated region
  $region14: #{vision_discriminator_forward.11} parent=0 // pred_check
    %p224 = pneg %p14
  $region15: #{vision_discriminator_forward.11} parent=0 // pred_check_branch
    %226 = sbr.rel (%p224) target = $region17
  $region16: #{vision_discriminator_forward.11} parent=0 // pred_region
    %v227 = vld [vmem:[#allocation2] sm:$0xff]
    %v228 = vld [vmem:[#allocation2 + $0x8] sm:$0xff]
    %v229 = vld [vmem:[#allocation2 + $0x10] sm:$0xff]
    %v230 = vld [vmem:[#allocation2 + $0x18] sm:$0xff]
    %231 = vst [vmem:[%s2] sm:$0xff] %v227
    %232 = vst [vmem:[%s2 + $0x8] sm:$0xff] %v228
    %233 = vst [vmem:[%s2 + $0x10] sm:$0xff] %v229
    %234 = vst [vmem:[%s2 + $0x18] sm:$0xff] %v230
    %v235 = vadd.f32 %v227, %v228
    %v236 = vadd.f32 %v235, %v229
    %v237 = vadd.f32 %v236, %v230
    %v238 = vrot.slane %v237, 4
    %v239 = vadd.f32 %v237, %v238
    %v240 = vrot.slane %v239, 2
    %v241 = vadd.f32 %v239, %v240
    %v242 = vrot.slane %v241, 1
    %v243 = vadd.f32 %v241, %v242
    %244 = vst [vmem:[%s3] sm:$0x1] %v243
    %v245 = vmul.f32 %v227, %v227
    %v246 = vmul.f32 %v228, %v228
    %v247 = vmul.f32 %v229, %v229
    %v248 = vmul.f32 %v230, %v230
    %v249 = vadd.f32 %v245, %v246
    %v250 = vadd.f32 %v249, %v247
    %v251 = vadd.f32 %v250, %v248
    %v252 = vrot.slane %v251, 4
    %v253 = vadd.f32 %v251, %v252
    %v254 = vrot.slane %v253, 2
    %v255 = vadd.f32 %v253, %v254
    %v256 = vrot.slane %v255, 1
    %v257 = vadd.f32 %v255, %v256
    %258 = vst [vmem:[%s4] sm:$0x1] %v257
  $region17: #{vision_discriminator_forward.11} parent=0 // pred_fallthru
    _
  // Predicated region
  $region18: #{vision_discriminator_forward.11} parent=0 // pred_check
    _
  $region19: #{vision_discriminator_forward.11} parent=0 // pred_check_branch
    %260 = sbr.rel (0) target = $region21
  $region20: #{vision_discriminator_forward.11} parent=0 // pred_region
    _
  $region21: #{vision_discriminator_forward.11} parent=0 // pred_fallthru
    _
  // Predicated region
  $region22: #{vision_discriminator_forward.11} parent=0 // pred_check
    _
  $region23: #{vision_discriminator_forward.11} parent=0 // pred_check_branch
    %262 = sbr.rel (0) target = $region25
  $region24: #{vision_discriminator_forward.11} parent=0 // pred_region
    _
  $region25: #{vision_discriminator_forward.11} parent=0 // pred_fallthru
    _
  // Predicated region
  $region26: #{vision_discriminator_forward.11} parent=0 // pred_check
    _
  $region27: #{vision_discriminator_forward.11} parent=0 // pred_check_branch
    %264 = sbr.rel (0) target = $region29
  $region28: #{vision_discriminator_forward.11} parent=0 // pred_region
    _
  $region29: #{vision_discriminator_forward.11} parent=0 // pred_fallthru
    _
  // Predicated region
  $region30: #{vision_discriminator_forward.11} parent=0 // pred_check
    _
  $region31: #{vision_discriminator_forward.11} parent=0 // pred_check_branch
    %266 = sbr.rel (0) target = $region33
  $region32: #{vision_discriminator_forward.11} parent=0 // pred_region
    _
  $region33: #{vision_discriminator_forward.11} parent=0 // pred_fallthru
    _
  // Predicated region
  $region34: #{vision_discriminator_forward.11} parent=0 // pred_check
    _
  $region35: #{vision_discriminator_forward.11} parent=0 // pred_check_branch
    %268 = sbr.rel (0) target = $region37
  $region36: #{vision_discriminator_forward.11} parent=0 // pred_region
    _
  $region37: #{vision_discriminator_forward.11} parent=0 // pred_fallthru
    _
  // Predicated region
  $region38: #{vision_discriminator_forward.11} parent=0 // pred_check
    _
  $region39: #{vision_discriminator_forward.11} parent=0 // pred_check_branch
    %270 = sbr.rel (0) target = $region41
  $region40: #{vision_discriminator_forward.11} parent=0 // pred_region
    _
  $region41: #{vision_discriminator_forward.11} parent=0 // pred_fallthru
    _

// kernel: vision_discriminator_forward.13
$region0: #{vision_discriminator_forward.13}
  #allocation0 [shape = 'u32[]', space=smem, size = 0x4, offset = 0x4, fixed_abs, tag = 'smem constant byte address 0x4 - core index']
  #allocation1 [shape = 'u32[72,128]{1,0:T(1,128)}', space=vmem, size = 0x9000, scoped, tag = 'internal scratch']
  #allocation2 [shape = 'f32[16,256]{1,0:T(8,128)}', space=vmem, size = 0x4000, scoped, tag = 'scratch operand']
  #allocation3 [shape = 'f32[1,1]{1,0:T(1,128)S(1)}', space=vmem, size = 0x200, scoped, tag = 'scoped memory for vision_discriminator_forward.13']
  %s0 = inlined_call_operand.vmem [shape: bf16[16,128], index: 0, kind: input, shape index: {}]
  %s1 = inlined_call_operand.vmem [shape: bf16[128,256], index: 1, kind: input, shape index: {}]
  %s2 = inlined_call_operand.vmem [shape: f32[1,256], index: 2, kind: input, shape index: {}]
  %s3 = inlined_call_operand.vmem [shape: f32[1,256], index: 3, kind: input, shape index: {}]
  %s4 = inlined_call_operand.<no memory space> [shape: f32[1,1], index: 4, kind: input, shape index: {}]
  %s5 = inlined_call_operand.vmem [shape: f32[16,1], index: 5, kind: output, shape index: {}]
  %s6 = sld [smem:[#allocation0]]
  $region38: #{vision_discriminator_forward.13} parent=0
    _
  %s8 = ssub.s32 1, %s6
  %s9 = scalar_select 0, %s8, %s6
  %v10 = vstv %s4
  %11 = vst [vmem:[#allocation3] sm:$0x1] %v10
  // Predicated region
  $region2: #{vision_discriminator_forward.13} parent=0 // pred_check
    _
  $region3: #{vision_discriminator_forward.13} parent=0 // pred_check_branch
    %13 = sbr.rel (0) target = $region5
  $region4: #{vision_discriminator_forward.13} parent=0 // pred_region
    _
  $region5: #{vision_discriminator_forward.13} parent=0 // pred_fallthru
    _
  // Predicated region
  $region6: #{vision_discriminator_forward.13} parent=0 // pred_check
    _
  $region7: #{vision_discriminator_forward.13} parent=0 // pred_check_branch
    %15 = sbr.rel (0) target = $region9
  $region8: #{vision_discriminator_forward.13} parent=0 // pred_region
    _
  $region9: #{vision_discriminator_forward.13} parent=0 // pred_fallthru
    _
  // Predicated region
  $region10: #{vision_discriminator_forward.13} parent=0 // pred_check
    _
  $region11: #{vision_discriminator_forward.13} parent=0 // pred_check_branch
    %17 = sbr.rel (0) target = $region13
  $region12: #{vision_discriminator_forward.13} parent=0 // pred_region
    _
  $region13: #{vision_discriminator_forward.13} parent=0 // pred_fallthru
    _
  // Predicated region
  $region14: #{vision_discriminator_forward.13} parent=0 // pred_check
    _
  $region15: #{vision_discriminator_forward.13} parent=0 // pred_check_branch
    %19 = sbr.rel (0) target = $region17
  $region16: #{vision_discriminator_forward.13} parent=0 // pred_region
    _
  $region17: #{vision_discriminator_forward.13} parent=0 // pred_fallthru
    _
  // Predicated region
  $region18: #{vision_discriminator_forward.13} parent=0 // pred_check
    _
  $region19: #{vision_discriminator_forward.13} parent=0 // pred_check_branch
    %21 = sbr.rel (0) target = $region21
  $region20: #{vision_discriminator_forward.13} parent=0 // pred_region
    _
  $region21: #{vision_discriminator_forward.13} parent=0 // pred_fallthru
    _
  %p22 = scmp.eq.s32.totalorder 0, 0
  // Predicated region
  $region22: #{vision_discriminator_forward.13} parent=0 // pred_check
    %p23 = pneg %p22
  $region23: #{vision_discriminator_forward.13} parent=0 // pred_check_branch
    %25 = sbr.rel (%p23) target = $region25
  $region24: #{vision_discriminator_forward.13} parent=0 // pred_region
    %26 = vst [vmem:[#allocation2] sm:$0xff] 0.0
    %27 = vst [vmem:[#allocation2 + $0x8] sm:$0xff] 0.0
    %28 = vst [vmem:[#allocation2 + $0x10] sm:$0xff] 0.0
    %29 = vst [vmem:[#allocation2 + $0x18] sm:$0xff] 0.0
  $region25: #{vision_discriminator_forward.13} parent=0 // pred_fallthru
    _
  %v30 = vld [vmem:[#allocation2] sm:$0xff]
  %v31 = vld [vmem:[#allocation2 + $0x8] sm:$0xff]
  %v32 = vld [vmem:[#allocation2 + $0x10] sm:$0xff]
  %v33 = vld [vmem:[#allocation2 + $0x18] sm:$0xff]
  %v34 = vld [vmem:[%s0] sm:$0xf]
  %v35 = vld [vmem:[%s0 + $0x4] sm:$0xf]
  %v36 = vld [vmem:[%s1] sm:$0xff]
  %v37 = vld [vmem:[%s1 + $0x8] sm:$0xff]
  %v38 = vld [vmem:[%s1 + $0x10] sm:$0xff]
  %v39 = vld [vmem:[%s1 + $0x18] sm:$0xff]
  %v40 = vld [vmem:[%s1 + $0x20] sm:$0xff]
  %v41 = vld [vmem:[%s1 + $0x28] sm:$0xff]
  %v42 = vld [vmem:[%s1 + $0x30] sm:$0xff]
  %v43 = vld [vmem:[%s1 + $0x38] sm:$0xff]
  %v44 = vld [vmem:[%s1 + $0x40] sm:$0xff]
  %v45 = vld [vmem:[%s1 + $0x48] sm:$0xff]
  %v46 = vld [vmem:[%s1 + $0x50] sm:$0xff]
  %v47 = vld [vmem:[%s1 + $0x58] sm:$0xff]
  %v48 = vld [vmem:[%s1 + $0x60] sm:$0xff]
  %v49 = vld [vmem:[%s1 + $0x68] sm:$0xff]
  %v50 = vld [vmem:[%s1 + $0x70] sm:$0xff]
  %v51 = vld [vmem:[%s1 + $0x78] sm:$0xff]
  %v54 = vunpack.c.l.b16 %v34
  %v55 = vunpack.c.l.b16 %v35
  %v56 = vpack.c.b16 %v55, %v54
  %v74 = vunpack.c.l.b16 %v36
  %v75 = vunpack.c.h.b16 %v36
  %v76 = vunpack.c.l.b16 %v37
  %v77 = vunpack.c.h.b16 %v37
  %v78 = vunpack.c.l.b16 %v38
  %v79 = vunpack.c.h.b16 %v38
  %v80 = vunpack.c.l.b16 %v39
  %v81 = vunpack.c.h.b16 %v39
  %v82 = vunpack.c.l.b16 %v40
  %v83 = vunpack.c.h.b16 %v40
  %v84 = vunpack.c.l.b16 %v41
  %v85 = vunpack.c.h.b16 %v41
  %v86 = vunpack.c.l.b16 %v42
  %v87 = vunpack.c.h.b16 %v42
  %v88 = vunpack.c.l.b16 %v43
  %v89 = vunpack.c.h.b16 %v43
  %v90 = vunpack.c.l.b16 %v44
  %v91 = vunpack.c.h.b16 %v44
  %v92 = vunpack.c.l.b16 %v45
  %v93 = vunpack.c.h.b16 %v45
  %v94 = vunpack.c.l.b16 %v46
  %v95 = vunpack.c.h.b16 %v46
  %v96 = vunpack.c.l.b16 %v47
  %v97 = vunpack.c.h.b16 %v47
  %v98 = vunpack.c.l.b16 %v48
  %v99 = vunpack.c.h.b16 %v48
  %v100 = vunpack.c.l.b16 %v49
  %v101 = vunpack.c.h.b16 %v49
  %v102 = vunpack.c.l.b16 %v50
  %v103 = vunpack.c.h.b16 %v50
  %v104 = vunpack.c.l.b16 %v51
  %v105 = vunpack.c.h.b16 %v51
  %v106 = vpack.c.b16 %v76, %v74
  %v107 = vpack.c.b16 %v77, %v75
  %v108 = vpack.c.b16 %v80, %v78
  %v109 = vpack.c.b16 %v81, %v79
  %v110 = vpack.c.b16 %v84, %v82
  %v111 = vpack.c.b16 %v85, %v83
  %v112 = vpack.c.b16 %v88, %v86
  %v113 = vpack.c.b16 %v89, %v87
  %v114 = vpack.c.b16 %v92, %v90
  %v115 = vpack.c.b16 %v93, %v91
  %v116 = vpack.c.b16 %v96, %v94
  %v117 = vpack.c.b16 %v97, %v95
  %v118 = vpack.c.b16 %v100, %v98
  %v119 = vpack.c.b16 %v101, %v99
  %v120 = vpack.c.b16 %v104, %v102
  %v121 = vpack.c.b16 %v105, %v103
  %138 = vmatpush.bf16.msra.mxu0 %v120
  %139 = vmatpush.bf16.msra.mxu0 %v118
  %140 = vmatpush.bf16.msra.mxu0 %v116
  %141 = vmatpush.bf16.msra.mxu0 %v114
  %142 = vmatpush.bf16.msra.mxu0 %v112
  %143 = vmatpush.bf16.msra.mxu0 %v110
  %144 = vmatpush.bf16.msra.mxu0 %v108
  %145 = vmatpush.bf16.msra.mxu0 %v106
  %146 = vmatmul.bf16.gmra.mxu0 %v56
  %v147 = vpop.f32.mrf.mxu0
  %v148 = vadd.f32 0.0, %v147
  %v149 = vpop.f32.mrf.mxu0
  %v150 = vadd.f32 0.0, %v149
  %151 = vdwg.mxu0
  %152 = vmatpush.bf16.msra.mxu0 %v121
  %153 = vmatpush.bf16.msra.mxu0 %v119
  %154 = vmatpush.bf16.msra.mxu0 %v117
  %155 = vmatpush.bf16.msra.mxu0 %v115
  %156 = vmatpush.bf16.msra.mxu0 %v113
  %157 = vmatpush.bf16.msra.mxu0 %v111
  %158 = vmatpush.bf16.msra.mxu0 %v109
  %159 = vmatpush.bf16.msra.mxu0 %v107
  %160 = vmatmul.bf16.gmra.mxu0 %v56
  %v161 = vpop.f32.mrf.mxu0
  %v162 = vadd.f32 0.0, %v161
  %v163 = vpop.f32.mrf.mxu0
  %v164 = vadd.f32 0.0, %v163
  %165 = vdwg.mxu0
  %v166 = vadd.f32 %v30, %v148
  %v167 = vadd.f32 %v31, %v162
  %v168 = vadd.f32 %v32, %v150
  %v169 = vadd.f32 %v33, %v164
  %170 = vst [vmem:[#allocation2] sm:$0xff] %v166
  %171 = vst [vmem:[#allocation2 + $0x8] sm:$0xff] %v167
  %172 = vst [vmem:[#allocation2 + $0x10] sm:$0xff] %v168
  %173 = vst [vmem:[#allocation2 + $0x18] sm:$0xff] %v169
  // Predicated region
  $region26: #{vision_discriminator_forward.13} parent=0 // pred_check
    %p174 = pneg %p22
  $region27: #{vision_discriminator_forward.13} parent=0 // pred_check_branch
    %176 = sbr.rel (%p174) target = $region29
  $region28: #{vision_discriminator_forward.13} parent=0 // pred_region
    %v177 = vld [vmem:[#allocation2] sm:$0xff]
    %v178 = vld [vmem:[#allocation2 + $0x8] sm:$0xff]
    %v179 = vld [vmem:[#allocation2 + $0x10] sm:$0xff]
    %v180 = vld [vmem:[#allocation2 + $0x18] sm:$0xff]
    %v181 = vld [vmem:[%s2] sm:$0x3]
    %v183 = vperm.slane %v181, 0
    %v184 = vperm.slane %v181, 1
    %v187 = vadd.f32 %v177, %v183
    %v188 = vadd.f32 %v178, %v184
    %v189 = vadd.f32 %v179, %v183
    %v190 = vadd.f32 %v180, %v184
    %vm191 = vcmp.ge.f32.partialorder %v187, 0.0
    %vm192 = vcmp.ge.f32.partialorder %v188, 0.0
    %vm193 = vcmp.ge.f32.partialorder %v189, 0.0
    %vm194 = vcmp.ge.f32.partialorder %v190, 0.0
    %v195 = vmul.f32 %v187, 0.2
    %v196 = vmul.f32 %v188, 0.2
    %v197 = vmul.f32 %v189, 0.2
    %v198 = vmul.f32 %v190, 0.2
    %v199 = vsel %vm191, %v187, %v195
    %v200 = vsel %vm192, %v188, %v196
    %v201 = vsel %vm193, %v189, %v197
    %v202 = vsel %vm194, %v190, %v198
    %v203 = vld [vmem:[%s3] sm:$0x3]
    %v205 = vperm.slane %v203, 0
    %v206 = vperm.slane %v203, 1
    %v209 = vmul.f32 %v199, %v205
    %v210 = vmul.f32 %v200, %v206
    %v211 = vmul.f32 %v201, %v205
    %v212 = vmul.f32 %v202, %v206
    %v213 = vadd.f32 %v209, %v210
    %214 = vadd.xlane.f32.xlu0 %v213
    %v215 = vpop.xlane.xlu0 %214
    %v216 = vadd.f32 %v211, %v212
    %217 = vadd.xlane.f32.xlu0 %v216
    %v218 = vpop.xlane.xlu0 %217
    %v219 = vld [vmem:[#allocation3] sm:$0x1]
    %v221 = vperm.slane %v219, 0
    %v223 = vadd.f32 %v215, %v221
    %v224 = vadd.f32 %v218, %v221
    %vm225 = vcmask 7168
    %226 = vst.msk [vmem:[%s5] sm:$0xff] %vm225, %v223
    %227 = vst.msk [vmem:[%s5 + $0x8] sm:$0xff] %vm225, %v224
  $region29: #{vision_discriminator_forward.13} parent=0 // pred_fallthru
    _
  // Predicated region
  $region30: #{vision_discriminator_forward.13} parent=0 // pred_check
    _
  $region31: #{vision_discriminator_forward.13} parent=0 // pred_check_branch
    %229 = sbr.rel (0) target = $region33
  $region32: #{vision_discriminator_forward.13} parent=0 // pred_region
    _
  $region33: #{vision_discriminator_forward.13} parent=0 // pred_fallthru
    _
  // Predicated region
  $region34: #{vision_discriminator_forward.13} parent=0 // pred_check
    _
  $region35: #{vision_discriminator_forward.13} parent=0 // pred_check_branch
    %231 = sbr.rel (0) target = $region37
  $region36: #{vision_discriminator_forward.13} parent=0 // pred_region
    _
  $region37: #{vision_discriminator_forward.13} parent=0 // pred_fallthru
    _

</llo_original>
